<compile_context>
chip_gen: v5e
topology: v5e:2x2
jax: 0.10.0
libtpu: 0.0.40
codegen_flags: <defaults>
</compile_context>

<pallas_src>
import math
import functools

import jax
import jax.numpy as jnp
from jax import lax
from jax.experimental import pallas as pl
from jax.experimental.pallas import tpu as pltpu


# ----------------------------------------------------------------------------
# Fused kernel: one grid step = one (batch, L-chunk) tile.
# ----------------------------------------------------------------------------
def _mamba_kernel(h_ref, winx_ref, winz_ref, convw_ref, convb_ref,
                  wx_ref, wdt_ref, dtb_ref, a_ref, d_ref, wout_ref,
                  out_ref,
                  halo_ref, state_ref, da_ref, dbu_ref,
                  *, d_conv, dt_rank, d_state):
    chunk = pl.program_id(1)
    lc = h_ref.shape[1]                              # static chunk length

    @pl.when(chunk == 0)
    def _():                                         # new sequence: reset carries
        halo_ref[...] = jnp.zeros_like(halo_ref)
        state_ref[...] = jnp.zeros_like(state_ref)

    h = h_ref[0]                                                        # (Lc, d_model)

    # ---- in_proj (x and z branches) ----------------------------------------
    x = jnp.dot(h, winx_ref[...], preferred_element_type=jnp.float32)   # (Lc, d_inner)
    z = jnp.dot(h, winz_ref[...], preferred_element_type=jnp.float32)   # (Lc, d_inner)

    # ---- causal depthwise conv, halo of last K-1 rows carried across chunks -
    halo = halo_ref[...]                                                # (K-1, d_inner)
    xpad = jnp.concatenate([halo, x], axis=0)                           # (Lc+K-1, d_inner)
    conv = convb_ref[...]                                               # (1, d_inner)
    for w in range(d_conv):                                             # static unroll, K small
        conv = conv + convw_ref[pl.ds(w, 1), :] * xpad[w:w + lc, :]
    halo_ref[...] = x[lc - (d_conv - 1):, :]                            # carry for next chunk
    xc = conv * jax.nn.sigmoid(conv)                                    # SiLU, (Lc, d_inner)

    # ---- fused x_proj (dt | B | C) + dt_proj + stable softplus --------------
    xdbl = jnp.dot(xc, wx_ref[...], preferred_element_type=jnp.float32) # (Lc, dt_rank+2*ds)
    dt_low = xdbl[:, :dt_rank]
    bmat = xdbl[:, dt_rank:dt_rank + d_state]                           # (Lc, d_state)
    cmat = xdbl[:, dt_rank + d_state:]                                  # (Lc, d_state)
    delta = jnp.dot(dt_low, wdt_ref[...],
                    preferred_element_type=jnp.float32) + dtb_ref[...]  # (Lc, d_inner)
    delta = jnp.maximum(delta, 0.0) + jnp.log(1.0 + jnp.exp(-jnp.abs(delta)))

    # ---- vectorized precompute of dA and dB*u for the whole chunk -----------
    a_t = a_ref[...]                                                    # (d_state, d_inner) == A.T
    da_ref[...] = jnp.exp(delta[:, None, :] * a_t[None, :, :])          # (Lc, d_state, d_inner)
    dbu_ref[...] = (delta * xc)[:, None, :] * bmat[:, :, None]          # (Lc, d_state, d_inner)

    # ---- serial recurrence over the chunk (loop body is pure FMA + store) ---
    def body(t, st):
        st = da_ref[t] * st + dbu_ref[t]
        dbu_ref[t] = st                    # overwrite: dbu_ref now holds per-step states
        return st

    st = lax.fori_loop(0, lc, body, state_ref[...])
    state_ref[...] = st                    # carry SSM state to the next chunk

    # ---- vectorized C contraction, D skip, z gating, out_proj ---------------
    states = dbu_ref[...]                                               # (Lc, d_state, d_inner)
    y = jnp.sum(states * cmat[:, :, None], axis=1)                      # (Lc, d_inner)
    y = y + d_ref[...] * xc
    y = y * (z * jax.nn.sigmoid(z))
    out_ref[0] = jnp.dot(y, wout_ref[...], preferred_element_type=jnp.float32)


# ----------------------------------------------------------------------------
# Wrapper
# ----------------------------------------------------------------------------
def mamba_forward(h, p, l_chunk=None):
    B, L, d_model = h.shape
    d_inner = p['w_in_x_t'].shape[1]
    d_state = p['a_t'].shape[0]
    d_conv = p['conv_w'].shape[0]
    dt_rank = p['w_dt_t'].shape[0]

    if l_chunk is None:
        l_chunk = L if L <= 256 else 256
    l_chunk = min(l_chunk, L)
    if l_chunk < L:
        l_chunk = max(8, (l_chunk // 8) * 8)     # keep chunk sublane-aligned
    l_chunk = max(l_chunk, d_conv - 1)           # halo update needs Lc >= K-1
    n_chunks = pl.cdiv(L, l_chunk)
    lp = n_chunks * l_chunk
    hp = h if lp == L else jnp.pad(h, ((0, 0), (0, lp - L), (0, 0)))

    kern = functools.partial(_mamba_kernel, d_conv=d_conv,
                             dt_rank=dt_rank, d_state=d_state)

    def wspec(shape):
        return pl.BlockSpec(shape, lambda b, c: (0, 0))

    out = pl.pallas_call(
        kern,
        grid=(B, n_chunks),
        in_specs=[
            pl.BlockSpec((1, l_chunk, d_model), lambda b, c: (b, c, 0)),
            wspec(p['w_in_x_t'].shape),
            wspec(p['w_in_z_t'].shape),
            wspec(p['conv_w'].shape),
            wspec(p['conv_b'].shape),
            wspec(p['w_x_t'].shape),
            wspec(p['w_dt_t'].shape),
            wspec(p['dt_bias'].shape),
            wspec(p['a_t'].shape),
            wspec(p['D'].shape),
            wspec(p['w_out_t'].shape),
        ],
        out_specs=pl.BlockSpec((1, l_chunk, d_model), lambda b, c: (b, c, 0)),
        out_shape=jax.ShapeDtypeStruct((B, lp, d_model), jnp.float32),
        scratch_shapes=[
            pltpu.VMEM((d_conv - 1, d_inner), jnp.float32),          # conv halo
            pltpu.VMEM((d_state, d_inner), jnp.float32),             # SSM state
            pltpu.VMEM((l_chunk, d_state, d_inner), jnp.float32),    # dA
            pltpu.VMEM((l_chunk, d_state, d_inner), jnp.float32),    # dB*u -> states
        ],
        compiler_params=pltpu.CompilerParams(
            dimension_semantics=("parallel", "arbitrary"),
            vmem_limit_bytes=32 * 1024 * 1024),
    )(hp, p['w_in_x_t'], p['w_in_z_t'], p['conv_w'], p['conv_b'],
      p['w_x_t'], p['w_dt_t'], p['dt_bias'], p['a_t'], p['D'], p['w_out_t'])

    return out[:, :L]


# ----------------------------------------------------------------------------
# Deterministic parameter init mirroring the PyTorch module's shapes.
# ----------------------------------------------------------------------------
def init_params(key, d_model, d_state=16, d_conv=4, expand=2,
                dt_min=0.001, dt_max=0.1, dt_init_floor=1e-4):
    d_inner = int(expand * d_model)
    dt_rank = math.ceil(d_model / 16)
    ks = jax.random.split(key, 8)

    def uni(k, shape, bound):
        return jax.random.uniform(k, shape, jnp.float32, -bound, bound)

    w_in = uni(ks[0], (2 * d_inner, d_model), 1.0 / math.sqrt(d_model))       # in_proj.weight
    conv_w = uni(ks[1], (d_inner, d_conv), 1.0 / math.sqrt(d_conv))           # conv1d.weight (d,1,w)
    conv_b = uni(ks[2], (d_inner,), 1.0 / math.sqrt(d_conv))                  # conv1d.bias
    w_x = uni(ks[3], (dt_rank + 2 * d_state, d_inner), 1.0 / math.sqrt(d_inner))  # x_proj.weight
    dt_init_std = dt_rank ** (-0.5)
    w_dt = uni(ks[4], (d_inner, dt_rank), dt_init_std)                        # dt_proj.weight
    dt = jnp.exp(jax.random.uniform(ks[5], (d_inner,), jnp.float32)
                 * (math.log(dt_max) - math.log(dt_min)) + math.log(dt_min))
    dt = jnp.maximum(dt, dt_init_floor)
    inv_dt = dt + jnp.log(-jnp.expm1(-dt))                                    # dt_proj.bias
    A = jnp.tile(jnp.arange(1, d_state + 1, dtype=jnp.float32)[None, :], (d_inner, 1))
    A_log = jnp.log(A)
    D = jnp.ones((d_inner,), jnp.float32)
    w_out = uni(ks[6], (d_model, d_inner), 1.0 / math.sqrt(d_inner))          # out_proj.weight

    return dict(
        w_in_x_t=w_in[:d_inner].T,                       # (d_model, d_inner)
        w_in_z_t=w_in[d_inner:].T,                       # (d_model, d_inner)
        conv_w=conv_w.T,                                 # (d_conv, d_inner)
        conv_b=conv_b[None, :],                          # (1, d_inner)
        w_x_t=w_x.T,                                     # (d_inner, dt_rank + 2*d_state)
        w_dt_t=w_dt.T,                                   # (dt_rank, d_inner)
        dt_bias=inv_dt[None, :],                         # (1, d_inner)
        a_t=(-jnp.exp(A_log)).T,                         # (d_state, d_inner) == A.T
        D=D[None, :],                                    # (1, d_inner)
        w_out_t=w_out.T,                                 # (d_inner, d_model)
    )


# Pure-JAX reference of the same forward pass (sanity check).
def mamba_reference(h, p):
    B, L, _ = h.shape
    dt_rank = p['w_dt_t'].shape[0]
    d_state = p['a_t'].shape[0]
    x = h @ p['w_in_x_t']
    z = h @ p['w_in_z_t']
    K = p['conv_w'].shape[0]
    xpad = jnp.pad(x, ((0, 0), (K - 1, 0), (0, 0)))
    conv = sum(p['conv_w'][w][None, None, :] * xpad[:, w:w + L, :] for w in range(K))
    conv = conv + p['conv_b'][None]
    xc = conv * jax.nn.sigmoid(conv)
    xdbl = xc @ p['w_x_t']
    dt_low = xdbl[..., :dt_rank]
    Bm = xdbl[..., dt_rank:dt_rank + d_state]
    Cm = xdbl[..., dt_rank + d_state:]
    delta = jax.nn.softplus(dt_low @ p['w_dt_t'] + p['dt_bias'][None])
    A = p['a_t'].T                                       # (d_inner, d_state)

    def step(st, inp):
        d_l, x_l, b_l, c_l = inp
        dA = jnp.exp(d_l[:, None] * A)
        dBu = d_l[:, None] * b_l[None, :] * x_l[:, None]
        st = dA * st + dBu
        return st, (st * c_l[None, :]).sum(-1)

    ys = []
    for b in range(B):
        _, yb = lax.scan(step, jnp.zeros_like(A), (delta[b], xc[b], Bm[b], Cm[b]))
        ys.append(yb)
    y = jnp.stack(ys)
    y = y + xc * p['D'][None]
    y = y * (z * jax.nn.sigmoid(z))
    return y @ p['w_out_t']


if __name__ == "__main__":
    # TODO(synk): the inference_params cache path (`step`, conv/ssm state caches,
    # .cpu() last-state return) is decode-time bookkeeping and is not implemented.
    key = jax.random.PRNGKey(0)
    d_model = 32            # -> d_inner=64, dt_rank=2, d_state=16, d_conv=4
    batch, seqlen = 2, 16
    pkey, hkey = jax.random.split(key)
    params = init_params(pkey, d_model)
    hidden_states = jax.random.normal(hkey, (batch, seqlen, d_model), jnp.float32)

    # l_chunk=8 forces 2 L-chunks so the halo / state carry across chunks is exercised.
    out = mamba_forward(hidden_states, params, l_chunk=8)
    out = jax.block_until_ready(out)

    ref = mamba_reference(hidden_states, params)
    assert out.shape == (batch, seqlen, d_model)
    assert jnp.allclose(out, ref, atol=1e-2, rtol=1e-2), float(jnp.max(jnp.abs(out - ref)))
    print("KERNEL_OK")
</pallas_src>

<mosaic_0001>
module attributes {stable_mosaic.version = 11 : i64} {
  func.func @_mamba_kernel(%arg0: i32, %arg1: i32, %arg2: memref<1x8x32xf32, #tpu.memory_space<vmem>>, %arg3: memref<32x64xf32, #tpu.memory_space<vmem>>, %arg4: memref<32x64xf32, #tpu.memory_space<vmem>>, %arg5: memref<4x64xf32, #tpu.memory_space<vmem>>, %arg6: memref<1x64xf32, #tpu.memory_space<vmem>>, %arg7: memref<64x34xf32, #tpu.memory_space<vmem>>, %arg8: memref<2x64xf32, #tpu.memory_space<vmem>>, %arg9: memref<1x64xf32, #tpu.memory_space<vmem>>, %arg10: memref<16x64xf32, #tpu.memory_space<vmem>>, %arg11: memref<1x64xf32, #tpu.memory_space<vmem>>, %arg12: memref<64x32xf32, #tpu.memory_space<vmem>>, %arg13: memref<1x8x32xf32, #tpu.memory_space<vmem>>, %arg14: memref<3x64xf32, #tpu.memory_space<vmem>>, %arg15: memref<16x64xf32, #tpu.memory_space<vmem>>, %arg16: memref<8x16x64xf32, #tpu.memory_space<vmem>>, %arg17: memref<8x16x64xf32, #tpu.memory_space<vmem>>) attributes {dimension_semantics = [#tpu.dimension_semantics<parallel>, #tpu.dimension_semantics<arbitrary>], iteration_bounds = array<i64: 2, 2>, scalar_prefetch = 0 : i64, scratch_operands = 4 : i64, tpu.core_type = #tpu.core_type<tc>, window_params = [{transform_indices = @transform_0, window_bounds = array<i64: 1, 8, 32>}, {pipeline_mode = #tpu.pipeline_mode<synchronous>, transform_indices = @transform_1, window_bounds = array<i64: 32, 64>}, {pipeline_mode = #tpu.pipeline_mode<synchronous>, transform_indices = @transform_2, window_bounds = array<i64: 32, 64>}, {pipeline_mode = #tpu.pipeline_mode<synchronous>, transform_indices = @transform_3, window_bounds = array<i64: 4, 64>}, {pipeline_mode = #tpu.pipeline_mode<synchronous>, transform_indices = @transform_4, window_bounds = array<i64: 1, 64>}, {pipeline_mode = #tpu.pipeline_mode<synchronous>, transform_indices = @transform_5, window_bounds = array<i64: 64, 34>}, {pipeline_mode = #tpu.pipeline_mode<synchronous>, transform_indices = @transform_6, window_bounds = array<i64: 2, 64>}, {pipeline_mode = #tpu.pipeline_mode<synchronous>, transform_indices = @transform_7, window_bounds = array<i64: 1, 64>}, {pipeline_mode = #tpu.pipeline_mode<synchronous>, transform_indices = @transform_8, window_bounds = array<i64: 16, 64>}, {pipeline_mode = #tpu.pipeline_mode<synchronous>, transform_indices = @transform_9, window_bounds = array<i64: 1, 64>}, {pipeline_mode = #tpu.pipeline_mode<synchronous>, transform_indices = @transform_10, window_bounds = array<i64: 64, 32>}, {transform_indices = @transform_11, window_bounds = array<i64: 1, 8, 32>}]} {
    %c0_i32 = arith.constant 0 : i32
    %0 = arith.cmpi eq, %arg1, %c0_i32 : i32
    %1 = arith.extui %0 : i1 to i32
    %c0_i32_0 = arith.constant 0 : i32
    %2 = arith.cmpi ne, %1, %c0_i32_0 : i32
    scf.if %2 {
      %cst_58 = arith.constant 0.000000e+00 : f32
      %101 = vector.broadcast %cst_58 : f32 to vector<3x64xf32>
      %c0_59 = arith.constant 0 : index
      %c0_60 = arith.constant 0 : index
      %102 = vector.load %arg14[%c0_59, %c0_60] : memref<3x64xf32, #tpu.memory_space<vmem>>, vector<3x64xf32>
      tpu.vector_store %arg14[%c0_59, %c0_60], %101 {strides = array<i32>} : memref<3x64xf32, #tpu.memory_space<vmem>>, vector<3x64xf32>,
      %cst_61 = arith.constant 0.000000e+00 : f32
      %103 = vector.broadcast %cst_61 : f32 to vector<16x64xf32>
      %c0_62 = arith.constant 0 : index
      %c0_63 = arith.constant 0 : index
      %104 = vector.load %arg15[%c0_62, %c0_63] : memref<16x64xf32, #tpu.memory_space<vmem>>, vector<16x64xf32>
      tpu.vector_store %arg15[%c0_62, %c0_63], %103 {strides = array<i32>} : memref<16x64xf32, #tpu.memory_space<vmem>>, vector<16x64xf32>,
    } else {
    }
    %c0 = arith.constant 0 : index
    %c0_1 = arith.constant 0 : index
    %c0_2 = arith.constant 0 : index
    %3 = vector.load %arg2[%c0, %c0_1, %c0_2] : memref<1x8x32xf32, #tpu.memory_space<vmem>>, vector<1x8x32xf32>
    %4 = vector.shape_cast %3 : vector<1x8x32xf32> to vector<8x32xf32>
    %c0_3 = arith.constant 0 : index
    %c0_4 = arith.constant 0 : index
    %5 = vector.load %arg3[%c0_3, %c0_4] : memref<32x64xf32, #tpu.memory_space<vmem>>, vector<32x64xf32>
    %cst = arith.constant dense<0.000000e+00> : vector<8x64xf32>
    %6 = tpu.matmul %4, %5, %cst {dimension_numbers = #tpu.dot_dimension_numbers<[1], [0], [0], [1], [0, 0, 1, 1], [], []>} : vector<8x32xf32>, vector<32x64xf32>, vector<8x64xf32> -> vector<8x64xf32>
    %c0_5 = arith.constant 0 : index
    %c0_6 = arith.constant 0 : index
    %7 = vector.load %arg4[%c0_5, %c0_6] : memref<32x64xf32, #tpu.memory_space<vmem>>, vector<32x64xf32>
    %cst_7 = arith.constant dense<0.000000e+00> : vector<8x64xf32>
    %8 = tpu.matmul %4, %7, %cst_7 {dimension_numbers = #tpu.dot_dimension_numbers<[1], [0], [0], [1], [0, 0, 1, 1], [], []>} : vector<8x32xf32>, vector<32x64xf32>, vector<8x64xf32> -> vector<8x64xf32>
    %c0_8 = arith.constant 0 : index
    %c0_9 = arith.constant 0 : index
    %9 = vector.load %arg14[%c0_8, %c0_9] : memref<3x64xf32, #tpu.memory_space<vmem>>, vector<3x64xf32>
    %10 = tpu.concatenate %9, %6 in 0 : vector<3x64xf32>, vector<8x64xf32> -> vector<11x64xf32>
    %c0_10 = arith.constant 0 : index
    %c0_11 = arith.constant 0 : index
    %11 = vector.load %arg6[%c0_10, %c0_11] : memref<1x64xf32, #tpu.memory_space<vmem>>, vector<1x64xf32>
    %c0_12 = arith.constant 0 : index
    %c0_13 = arith.constant 0 : index
    %12 = vector.load %arg5[%c0_12, %c0_13] : memref<4x64xf32, #tpu.memory_space<vmem>>, vector<1x64xf32>
    %13 = vector.extract_strided_slice %10 {offsets = [0, 0], sizes = [8, 64], strides = [1, 1]} : vector<11x64xf32> to vector<8x64xf32>
    %14 = vector.broadcast %12 : vector<1x64xf32> to vector<8x64xf32>
    %15 = arith.mulf %14, %13 : vector<8x64xf32>
    %16 = vector.broadcast %11 : vector<1x64xf32> to vector<8x64xf32>
    %17 = arith.addf %16, %15 : vector<8x64xf32>
    %c1 = arith.constant 1 : index
    %c0_14 = arith.constant 0 : index
    %18 = vector.load %arg5[%c1, %c0_14] : memref<4x64xf32, #tpu.memory_space<vmem>>, vector<1x64xf32>
    %19 = vector.extract_strided_slice %10 {offsets = [1, 0], sizes = [8, 64], strides = [1, 1]} : vector<11x64xf32> to vector<8x64xf32>
    %20 = vector.broadcast %18 : vector<1x64xf32> to vector<8x64xf32>
    %21 = arith.mulf %20, %19 : vector<8x64xf32>
    %22 = arith.addf %17, %21 : vector<8x64xf32>
    %c2 = arith.constant 2 : index
    %c0_15 = arith.constant 0 : index
    %23 = vector.load %arg5[%c2, %c0_15] : memref<4x64xf32, #tpu.memory_space<vmem>>, vector<1x64xf32>
    %24 = vector.extract_strided_slice %10 {offsets = [2, 0], sizes = [8, 64], strides = [1, 1]} : vector<11x64xf32> to vector<8x64xf32>
    %25 = vector.broadcast %23 : vector<1x64xf32> to vector<8x64xf32>
    %26 = arith.mulf %25, %24 : vector<8x64xf32>
    %27 = arith.addf %22, %26 : vector<8x64xf32>
    %c3 = arith.constant 3 : index
    %c0_16 = arith.constant 0 : index
    %28 = vector.load %arg5[%c3, %c0_16] : memref<4x64xf32, #tpu.memory_space<vmem>>, vector<1x64xf32>
    %29 = vector.extract_strided_slice %10 {offsets = [3, 0], sizes = [8, 64], strides = [1, 1]} : vector<11x64xf32> to vector<8x64xf32>
    %30 = vector.broadcast %28 : vector<1x64xf32> to vector<8x64xf32>
    %31 = arith.mulf %30, %29 : vector<8x64xf32>
    %32 = arith.addf %27, %31 : vector<8x64xf32>
    %33 = vector.extract_strided_slice %6 {offsets = [5, 0], sizes = [3, 64], strides = [1, 1]} : vector<8x64xf32> to vector<3x64xf32>
    %c0_17 = arith.constant 0 : index
    %c0_18 = arith.constant 0 : index
    %34 = vector.load %arg14[%c0_17, %c0_18] : memref<3x64xf32, #tpu.memory_space<vmem>>, vector<3x64xf32>
    tpu.vector_store %arg14[%c0_17, %c0_18], %33 {strides = array<i32>} : memref<3x64xf32, #tpu.memory_space<vmem>>, vector<3x64xf32>,
    %35 = arith.negf %32 : vector<8x64xf32>
    %36 = math.exp %35 : vector<8x64xf32>
    %cst_19 = arith.constant 1.000000e+00 : f32
    %37 = vector.broadcast %cst_19 : f32 to vector<8x64xf32>
    %38 = arith.addf %37, %36 : vector<8x64xf32>
    %39 = arith.divf %37, %38 : vector<8x64xf32>
    %40 = arith.mulf %32, %39 : vector<8x64xf32>
    %c0_20 = arith.constant 0 : index
    %c0_21 = arith.constant 0 : index
    %41 = vector.load %arg7[%c0_20, %c0_21] : memref<64x34xf32, #tpu.memory_space<vmem>>, vector<64x34xf32>
    %cst_22 = arith.constant dense<0.000000e+00> : vector<8x34xf32>
    %42 = tpu.matmul %40, %41, %cst_22 {dimension_numbers = #tpu.dot_dimension_numbers<[1], [0], [0], [1], [0, 0, 1, 1], [], []>} : vector<8x64xf32>, vector<64x34xf32>, vector<8x34xf32> -> vector<8x34xf32>
    %43 = vector.extract_strided_slice %42 {offsets = [0, 0], sizes = [8, 2], strides = [1, 1]} : vector<8x34xf32> to vector<8x2xf32>
    %44 = vector.extract_strided_slice %42 {offsets = [0, 2], sizes = [8, 16], strides = [1, 1]} : vector<8x34xf32> to vector<8x16xf32>
    %45 = vector.extract_strided_slice %42 {offsets = [0, 18], sizes = [8, 16], strides = [1, 1]} : vector<8x34xf32> to vector<8x16xf32>
    %c0_23 = arith.constant 0 : index
    %c0_24 = arith.constant 0 : index
    %46 = vector.load %arg8[%c0_23, %c0_24] : memref<2x64xf32, #tpu.memory_space<vmem>>, vector<2x64xf32>
    %cst_25 = arith.constant dense<0.000000e+00> : vector<8x64xf32>
    %47 = tpu.matmul %43, %46, %cst_25 {dimension_numbers = #tpu.dot_dimension_numbers<[1], [0], [0], [1], [0, 0, 1, 1], [], []>} : vector<8x2xf32>, vector<2x64xf32>, vector<8x64xf32> -> vector<8x64xf32>
    %c0_26 = arith.constant 0 : index
    %c0_27 = arith.constant 0 : index
    %48 = vector.load %arg9[%c0_26, %c0_27] : memref<1x64xf32, #tpu.memory_space<vmem>>, vector<1x64xf32>
    %49 = vector.broadcast %48 : vector<1x64xf32> to vector<8x64xf32>
    %50 = arith.addf %47, %49 : vector<8x64xf32>
    %cst_28 = arith.constant 0.000000e+00 : f32
    %51 = vector.broadcast %cst_28 : f32 to vector<8x64xf32>
    %52 = arith.maximumf %50, %51 : vector<8x64xf32>
    %53 = math.absf %50 : vector<8x64xf32>
    %cst_29 = arith.constant 0.000000e+00 : f32
    %54 = vector.broadcast %cst_29 : f32 to vector<8x64xf32>
    %55 = arith.subf %54, %53 : vector<8x64xf32>
    %56 = math.exp %55 : vector<8x64xf32>
    %cst_30 = arith.constant 1.000000e+00 : f32
    %57 = vector.broadcast %cst_30 : f32 to vector<8x64xf32>
    %58 = arith.addf %57, %56 : vector<8x64xf32>
    %59 = math.log %58 : vector<8x64xf32>
    %60 = arith.addf %52, %59 : vector<8x64xf32>
    %c0_31 = arith.constant 0 : index
    %c0_32 = arith.constant 0 : index
    %61 = vector.load %arg10[%c0_31, %c0_32] : memref<16x64xf32, #tpu.memory_space<vmem>>, vector<16x64xf32>
    %62 = vector.shape_cast %60 : vector<8x64xf32> to vector<8x1x64xf32>
    %63 = vector.shape_cast %61 : vector<16x64xf32> to vector<1x16x64xf32>
    %64 = vector.broadcast %62 : vector<8x1x64xf32> to vector<8x16x64xf32>
    %65 = vector.broadcast %63 : vector<1x16x64xf32> to vector<8x16x64xf32>
    %66 = arith.mulf %64, %65 : vector<8x16x64xf32>
    %67 = math.exp %66 : vector<8x16x64xf32>
    %c0_33 = arith.constant 0 : index
    %c0_34 = arith.constant 0 : index
    %c0_35 = arith.constant 0 : index
    %68 = vector.load %arg16[%c0_33, %c0_34, %c0_35] : memref<8x16x64xf32, #tpu.memory_space<vmem>>, vector<8x16x64xf32>
    tpu.vector_store %arg16[%c0_33, %c0_34, %c0_35], %67 {strides = array<i32>} : memref<8x16x64xf32, #tpu.memory_space<vmem>>, vector<8x16x64xf32>,
    %69 = arith.mulf %60, %40 : vector<8x64xf32>
    %70 = vector.shape_cast %69 : vector<8x64xf32> to vector<8x1x64xf32>
    %71 = vector.shape_cast %44 : vector<8x16xf32> to vector<8x16x1xf32>
    %72 = vector.broadcast %70 : vector<8x1x64xf32> to vector<8x16x64xf32>
    %73 = vector.broadcast %71 : vector<8x16x1xf32> to vector<8x16x64xf32>
    %74 = arith.mulf %72, %73 : vector<8x16x64xf32>
    %c0_36 = arith.constant 0 : index
    %c0_37 = arith.constant 0 : index
    %c0_38 = arith.constant 0 : index
    %75 = vector.load %arg17[%c0_36, %c0_37, %c0_38] : memref<8x16x64xf32, #tpu.memory_space<vmem>>, vector<8x16x64xf32>
    tpu.vector_store %arg17[%c0_36, %c0_37, %c0_38], %74 {strides = array<i32>} : memref<8x16x64xf32, #tpu.memory_space<vmem>>, vector<8x16x64xf32>,
    %c0_39 = arith.constant 0 : index
    %c0_40 = arith.constant 0 : index
    %76 = vector.load %arg15[%c0_39, %c0_40] : memref<16x64xf32, #tpu.memory_space<vmem>>, vector<16x64xf32>
    %c0_i32_41 = arith.constant 0 : i32
    %c8_i32 = arith.constant 8 : i32
    %77 = arith.addi %c0_i32_41, %c8_i32 : i32
    %c1_i32 = arith.constant 1 : i32
    %78 = scf.for %arg18 = %c0_i32_41 to %77 step %c1_i32 iter_args(%arg19 = %76) -> (vector<16x64xf32>)  : i32 {
      %101 = arith.index_cast %arg18 : i32 to index
      %c0_58 = arith.constant 0 : index
      %c0_59 = arith.constant 0 : index
      %102 = vector.load %arg16[%101, %c0_58, %c0_59] : memref<8x16x64xf32, #tpu.memory_space<vmem>>, vector<1x16x64xf32>
      %103 = vector.shape_cast %102 : vector<1x16x64xf32> to vector<16x64xf32>
      %104 = arith.mulf %103, %arg19 : vector<16x64xf32>
      %105 = arith.index_cast %arg18 : i32 to index
      %c0_60 = arith.constant 0 : index
      %c0_61 = arith.constant 0 : index
      %106 = vector.load %arg17[%105, %c0_60, %c0_61] : memref<8x16x64xf32, #tpu.memory_space<vmem>>, vector<1x16x64xf32>
      %107 = vector.shape_cast %106 : vector<1x16x64xf32> to vector<16x64xf32>
      %108 = arith.addf %104, %107 : vector<16x64xf32>
      %109 = arith.index_cast %arg18 : i32 to index
      %c0_62 = arith.constant 0 : index
      %c0_63 = arith.constant 0 : index
      %110 = vector.load %arg17[%109, %c0_62, %c0_63] : memref<8x16x64xf32, #tpu.memory_space<vmem>>, vector<1x16x64xf32>
      %111 = vector.shape_cast %110 : vector<1x16x64xf32> to vector<16x64xf32>
      %112 = vector.shape_cast %108 : vector<16x64xf32> to vector<1x16x64xf32>
      tpu.vector_store %arg17[%109, %c0_62, %c0_63], %112 {strides = array<i32>} : memref<8x16x64xf32, #tpu.memory_space<vmem>>, vector<1x16x64xf32>,
      scf.yield %108 : vector<16x64xf32>
    }
    %c8_i32_42 = arith.constant 8 : i32
    %c0_43 = arith.constant 0 : index
    %c0_44 = arith.constant 0 : index
    %79 = vector.load %arg15[%c0_43, %c0_44] : memref<16x64xf32, #tpu.memory_space<vmem>>, vector<16x64xf32>
    tpu.vector_store %arg15[%c0_43, %c0_44], %78 {strides = array<i32>} : memref<16x64xf32, #tpu.memory_space<vmem>>, vector<16x64xf32>,
    %c0_45 = arith.constant 0 : index
    %c0_46 = arith.constant 0 : index
    %c0_47 = arith.constant 0 : index
    %80 = vector.load %arg17[%c0_45, %c0_46, %c0_47] : memref<8x16x64xf32, #tpu.memory_space<vmem>>, vector<8x16x64xf32>
    %81 = vector.shape_cast %45 : vector<8x16xf32> to vector<8x16x1xf32>
    %82 = vector.broadcast %81 : vector<8x16x1xf32> to vector<8x16x64xf32>
    %83 = arith.mulf %80, %82 : vector<8x16x64xf32>
    %cst_48 = arith.constant dense<0.000000e+00> : vector<8x64xf32>
    %84 = vector.multi_reduction <add>, %83, %cst_48 [1] : vector<8x16x64xf32> to vector<8x64xf32>
    %c0_49 = arith.constant 0 : index
    %c0_50 = arith.constant 0 : index
    %85 = vector.load %arg11[%c0_49, %c0_50] : memref<1x64xf32, #tpu.memory_space<vmem>>, vector<1x64xf32>
    %86 = vector.broadcast %85 : vector<1x64xf32> to vector<8x64xf32>
    %87 = arith.mulf %86, %40 : vector<8x64xf32>
    %88 = arith.addf %84, %87 : vector<8x64xf32>
    %89 = arith.negf %8 : vector<8x64xf32>
    %90 = math.exp %89 : vector<8x64xf32>
    %cst_51 = arith.constant 1.000000e+00 : f32
    %91 = vector.broadcast %cst_51 : f32 to vector<8x64xf32>
    %92 = arith.addf %91, %90 : vector<8x64xf32>
    %93 = arith.divf %91, %92 : vector<8x64xf32>
    %94 = arith.mulf %8, %93 : vector<8x64xf32>
    %95 = arith.mulf %88, %94 : vector<8x64xf32>
    %c0_52 = arith.constant 0 : index
    %c0_53 = arith.constant 0 : index
    %96 = vector.load %arg12[%c0_52, %c0_53] : memref<64x32xf32, #tpu.memory_space<vmem>>, vector<64x32xf32>
    %cst_54 = arith.constant dense<0.000000e+00> : vector<8x32xf32>
    %97 = tpu.matmul %95, %96, %cst_54 {dimension_numbers = #tpu.dot_dimension_numbers<[1], [0], [0], [1], [0, 0, 1, 1], [], []>} : vector<8x64xf32>, vector<64x32xf32>, vector<8x32xf32> -> vector<8x32xf32>
    %c0_55 = arith.constant 0 : index
    %c0_56 = arith.constant 0 : index
    %c0_57 = arith.constant 0 : index
    %98 = vector.load %arg13[%c0_55, %c0_56, %c0_57] : memref<1x8x32xf32, #tpu.memory_space<vmem>>, vector<1x8x32xf32>
    %99 = vector.shape_cast %98 : vector<1x8x32xf32> to vector<8x32xf32>
    %100 = vector.shape_cast %97 : vector<8x32xf32> to vector<1x8x32xf32>
    tpu.vector_store %arg13[%c0_55, %c0_56, %c0_57], %100 {strides = array<i32>} : memref<1x8x32xf32, #tpu.memory_space<vmem>>, vector<1x8x32xf32>,
    return
  }
  func.func @transform_0(%arg0: i32, %arg1: i32) -> (i32, i32, i32) {
    %c0_i32 = arith.constant 0 : i32
    %c0_i32_0 = arith.constant 0 : i32
    return %arg0, %arg1, %c0_i32 : i32, i32, i32
  }
  func.func @transform_1(%arg0: i32, %arg1: i32) -> (i32, i32) {
    %c0_i32 = arith.constant 0 : i32
    %c0_i32_0 = arith.constant 0 : i32
    %c0_i32_1 = arith.constant 0 : i32
    return %c0_i32, %c0_i32_0 : i32, i32
  }
  func.func @transform_2(%arg0: i32, %arg1: i32) -> (i32, i32) {
    %c0_i32 = arith.constant 0 : i32
    %c0_i32_0 = arith.constant 0 : i32
    %c0_i32_1 = arith.constant 0 : i32
    return %c0_i32, %c0_i32_0 : i32, i32
  }
  func.func @transform_3(%arg0: i32, %arg1: i32) -> (i32, i32) {
    %c0_i32 = arith.constant 0 : i32
    %c0_i32_0 = arith.constant 0 : i32
    %c0_i32_1 = arith.constant 0 : i32
    return %c0_i32, %c0_i32_0 : i32, i32
  }
  func.func @transform_4(%arg0: i32, %arg1: i32) -> (i32, i32) {
    %c0_i32 = arith.constant 0 : i32
    %c0_i32_0 = arith.constant 0 : i32
    %c0_i32_1 = arith.constant 0 : i32
    return %c0_i32, %c0_i32_0 : i32, i32
  }
  func.func @transform_5(%arg0: i32, %arg1: i32) -> (i32, i32) {
    %c0_i32 = arith.constant 0 : i32
    %c0_i32_0 = arith.constant 0 : i32
    %c0_i32_1 = arith.constant 0 : i32
    return %c0_i32, %c0_i32_0 : i32, i32
  }
  func.func @transform_6(%arg0: i32, %arg1: i32) -> (i32, i32) {
    %c0_i32 = arith.constant 0 : i32
    %c0_i32_0 = arith.constant 0 : i32
    %c0_i32_1 = arith.constant 0 : i32
    return %c0_i32, %c0_i32_0 : i32, i32
  }
  func.func @transform_7(%arg0: i32, %arg1: i32) -> (i32, i32) {
    %c0_i32 = arith.constant 0 : i32
    %c0_i32_0 = arith.constant 0 : i32
    %c0_i32_1 = arith.constant 0 : i32
    return %c0_i32, %c0_i32_0 : i32, i32
  }
  func.func @transform_8(%arg0: i32, %arg1: i32) -> (i32, i32) {
    %c0_i32 = arith.constant 0 : i32
    %c0_i32_0 = arith.constant 0 : i32
    %c0_i32_1 = arith.constant 0 : i32
    return %c0_i32, %c0_i32_0 : i32, i32
  }
  func.func @transform_9(%arg0: i32, %arg1: i32) -> (i32, i32) {
    %c0_i32 = arith.constant 0 : i32
    %c0_i32_0 = arith.constant 0 : i32
    %c0_i32_1 = arith.constant 0 : i32
    return %c0_i32, %c0_i32_0 : i32, i32
  }
  func.func @transform_10(%arg0: i32, %arg1: i32) -> (i32, i32) {
    %c0_i32 = arith.constant 0 : i32
    %c0_i32_0 = arith.constant 0 : i32
    %c0_i32_1 = arith.constant 0 : i32
    return %c0_i32, %c0_i32_0 : i32, i32
  }
  func.func @transform_11(%arg0: i32, %arg1: i32) -> (i32, i32, i32) {
    %c0_i32 = arith.constant 0 : i32
    %c0_i32_0 = arith.constant 0 : i32
    return %arg0, %arg1, %c0_i32 : i32, i32, i32
  }
}

</mosaic_0001>

<llo_original>
// kernel: tpu_custom_call.1
$region0: #{tpu_custom_call.1}
  #allocation0 [shape = 'u32[]', space=smem, size = 0x4, offset = 0x4, fixed_abs, tag = 'smem constant byte address 0x4 - core index']
  #allocation1 [shape = 'u32[72,128]{1,0:T(1,128)}', space=vmem, size = 0x9000, scoped, tag = 'internal scratch']
  #allocation2 [shape = 'f32[3,64]{1,0:T(4,128)}', space=vmem, size = 0x800, scoped, tag = 'scratch operand']
  #allocation3 [shape = 'f32[16,64]{1,0:T(8,128)}', space=vmem, size = 0x2000, scoped, tag = 'scratch operand']
  #allocation4 [shape = 'f32[8,16,64]{2,1,0:T(8,128)}', space=vmem, size = 0x10000, scoped, tag = 'scratch operand']
  #allocation5 [shape = 'f32[8,16,64]{2,1,0:T(8,128)}', space=vmem, size = 0x10000, scoped, tag = 'scratch operand']
  %s0 = inlined_call_operand.vmem [shape: f32[2,16,32], index: 0, kind: input, shape index: {}]
  %s1 = inlined_call_operand.vmem [shape: f32[32,64], index: 1, kind: input, shape index: {}]
  %s2 = inlined_call_operand.vmem [shape: f32[32,64], index: 2, kind: input, shape index: {}]
  %s3 = inlined_call_operand.vmem [shape: f32[4,64], index: 3, kind: input, shape index: {}]
  %s4 = inlined_call_operand.vmem [shape: f32[1,64], index: 4, kind: input, shape index: {}]
  %s5 = inlined_call_operand.vmem [shape: f32[64,34], index: 5, kind: input, shape index: {}]
  %s6 = inlined_call_operand.vmem [shape: f32[2,64], index: 6, kind: input, shape index: {}]
  %s7 = inlined_call_operand.vmem [shape: f32[1,64], index: 7, kind: input, shape index: {}]
  %s8 = inlined_call_operand.vmem [shape: f32[16,64], index: 8, kind: input, shape index: {}]
  %s9 = inlined_call_operand.vmem [shape: f32[1,64], index: 9, kind: input, shape index: {}]
  %s10 = inlined_call_operand.vmem [shape: f32[64,32], index: 10, kind: input, shape index: {}]
  %s11 = inlined_call_operand.hbm [shape: f32[2,16,32], index: 11, kind: output, shape index: {}]
  %s12 = sld [smem:[#allocation0]]
  $region88: #{tpu_custom_call.1} parent=0
    _
  %s14 = ssub.s32 1, %s12
  %s15 = scalar_select 0, %s14, %s12
  $region1: #{tpu_custom_call.1} parent=0
    #allocation6 [shape = 'u8[8192]{0}', space=vmem, size = 0x2000, scoped, tag = 'output window, operand 0']
    #allocation7 [shape = 's32[2]{0}', space=sflag, size = 0x8, scoped, tag = 'scoped memory for tpu_custom_call.1']
    %16 = vsyncpa [#allocation7], 0
    %s17 = scalar_lea.sflag [#allocation7], 1
    %18 = vsyncpa %s17, 0
    loop: start=0, step=1, limit=6
    $region2: #{tpu_custom_call.1} parent=1 // loop_pre_header
      _
    $region3: #{tpu_custom_call.1} parent=1 // loop_header
      %s20 = sphi 0, %s24
      %p21 = scmp.ge.s32.totalorder %s20, 6
      %s27 = sphi 0, %s39
      %s28 = sphi 0, %s35
      %s29 = sphi 0, %s27
      %s30 = sphi 0, %s28
      %s31 = sphi 0, %s29
      %s32 = sphi 0, %s30
      %s44 = sphi 0, %s46
      %s47 = sphi 0, %s44
      %s48 = sphi 0, %s47
      %s64 = sphi 0, %s48
      %s68 = sphi 0, %s68
      %s70 = sphi 0, %s68
      %s71 = sphi 0, %s70
      %s85 = sphi 0, %s71
      %s89 = sphi 0, %s89
      %s91 = sphi 0, %s89
      %s92 = sphi 0, %s91
      %s106 = sphi 0, %s92
      %s110 = sphi 0, %s110
      %s112 = sphi 0, %s110
      %s113 = sphi 0, %s112
      %s127 = sphi 0, %s113
      %s131 = sphi 0, %s131
      %s133 = sphi 0, %s131
      %s134 = sphi 0, %s133
      %s148 = sphi 0, %s134
      %s152 = sphi 0, %s152
      %s154 = sphi 0, %s152
      %s155 = sphi 0, %s154
      %s169 = sphi 0, %s155
      %s173 = sphi 0, %s173
      %s175 = sphi 0, %s173
      %s176 = sphi 0, %s175
      %s190 = sphi 0, %s176
      %s194 = sphi 0, %s194
      %s196 = sphi 0, %s194
      %s197 = sphi 0, %s196
      %s211 = sphi 0, %s197
      %s215 = sphi 0, %s215
      %s217 = sphi 0, %s215
      %s218 = sphi 0, %s217
      %s232 = sphi 0, %s218
      %s236 = sphi 0, %s236
      %s238 = sphi 0, %s236
      %s239 = sphi 0, %s238
      %s253 = sphi 0, %s239
      %s257 = sphi 0, %s257
      %s259 = sphi 0, %s257
      %s260 = sphi 0, %s259
      %s274 = sphi 0, %s260
      %s282 = sphi 0, %s284
      %s285 = sphi 0, %s282
      %s286 = sphi 0, %s285
      %s302 = sphi 0, %s286
    $region4: #{tpu_custom_call.1} parent=1 // loop_header_branch
      %23 = sbr.rel (%p21) target = $region8
    $region5: #{tpu_custom_call.1} parent=1 // loop_body
      %s25 = ssub.s32 %s20, 1
      %s26 = ssub.s32 %s20, 2
      %s33 = sadd.s32 1, %s28
      %p34 = scmp.ge.s32.totalorder %s33, 2
      %s35 = scalar_select %p34, 0, %s33
      %s36 = sadd.s32 1, %s27
      %s37 = scalar_select %p34, %s36, %s27
      %p38 = scmp.ge.s32.totalorder %s37, 2
      %s39 = scalar_select %p38, 0, %s37
      %s40 = ssub.s32 %s27, %s39
      %s41 = ssub.s32 %s28, %s35
      %s42 = sor.u32 %s40, %s41
      %p43 = scmp.eq.s32.totalorder %s42, 0
      %s45 = sadd.s32 %s44, 1
      %s46 = scalar_select %p43, %s44, %s45
      %p49 = pneg %p43
      %p50 = scmp.eq.s32.totalorder %s20, 3
      %p51 = por %p49, %p50
      %p52 = scmp.ne.s32.totalorder %s44, %s47
      %p53 = scmp.eq.s32.totalorder %s20, 0
      %p54 = por %p52, %p53
      %p55 = scmp.ne.s32.totalorder %s44, %s47
      %p56 = scmp.eq.s32.totalorder %s25, 3
      %p57 = por %p55, %p56
      %p58 = scmp.ne.s32.totalorder %s47, %s48
      %p59 = scmp.eq.s32.totalorder %s25, 0
      %p60 = por %p58, %p59
      %p61 = scmp.ne.s32.totalorder %s47, %s48
      %p62 = scmp.eq.s32.totalorder %s26, 3
      %p63 = por %p61, %p62
      %p65 = scmp.ne.s32.totalorder %s48, %s64
      %p66 = scmp.eq.s32.totalorder %s26, 0
      %p67 = por %p65, %p66
      %s69 = sadd.s32 %s68, 1
      %p72 = scmp.eq.s32.totalorder %s20, 3
      %p73 = scmp.ne.s32.totalorder %s68, %s70
      %p74 = scmp.eq.s32.totalorder %s20, 0
      %p75 = por %p73, %p74
      %p76 = scmp.ne.s32.totalorder %s68, %s70
      %p77 = scmp.eq.s32.totalorder %s25, 3
      %p78 = por %p76, %p77
      %p79 = scmp.ne.s32.totalorder %s70, %s71
      %p80 = scmp.eq.s32.totalorder %s25, 0
      %p81 = por %p79, %p80
      %p82 = scmp.ne.s32.totalorder %s70, %s71
      %p83 = scmp.eq.s32.totalorder %s26, 3
      %p84 = por %p82, %p83
      %p86 = scmp.ne.s32.totalorder %s71, %s85
      %p87 = scmp.eq.s32.totalorder %s26, 0
      %p88 = por %p86, %p87
      %s90 = sadd.s32 %s89, 1
      %p93 = scmp.eq.s32.totalorder %s20, 3
      %p94 = scmp.ne.s32.totalorder %s89, %s91
      %p95 = scmp.eq.s32.totalorder %s20, 0
      %p96 = por %p94, %p95
      %p97 = scmp.ne.s32.totalorder %s89, %s91
      %p98 = scmp.eq.s32.totalorder %s25, 3
      %p99 = por %p97, %p98
      %p100 = scmp.ne.s32.totalorder %s91, %s92
      %p101 = scmp.eq.s32.totalorder %s25, 0
      %p102 = por %p100, %p101
      %p103 = scmp.ne.s32.totalorder %s91, %s92
      %p104 = scmp.eq.s32.totalorder %s26, 3
      %p105 = por %p103, %p104
      %p107 = scmp.ne.s32.totalorder %s92, %s106
      %p108 = scmp.eq.s32.totalorder %s26, 0
      %p109 = por %p107, %p108
      %s111 = sadd.s32 %s110, 1
      %p114 = scmp.eq.s32.totalorder %s20, 3
      %p115 = scmp.ne.s32.totalorder %s110, %s112
      %p116 = scmp.eq.s32.totalorder %s20, 0
      %p117 = por %p115, %p116
      %p118 = scmp.ne.s32.totalorder %s110, %s112
      %p119 = scmp.eq.s32.totalorder %s25, 3
      %p120 = por %p118, %p119
      %p121 = scmp.ne.s32.totalorder %s112, %s113
      %p122 = scmp.eq.s32.totalorder %s25, 0
      %p123 = por %p121, %p122
      %p124 = scmp.ne.s32.totalorder %s112, %s113
      %p125 = scmp.eq.s32.totalorder %s26, 3
      %p126 = por %p124, %p125
      %p128 = scmp.ne.s32.totalorder %s113, %s127
      %p129 = scmp.eq.s32.totalorder %s26, 0
      %p130 = por %p128, %p129
      %s132 = sadd.s32 %s131, 1
      %p135 = scmp.eq.s32.totalorder %s20, 3
      %p136 = scmp.ne.s32.totalorder %s131, %s133
      %p137 = scmp.eq.s32.totalorder %s20, 0
      %p138 = por %p136, %p137
      %p139 = scmp.ne.s32.totalorder %s131, %s133
      %p140 = scmp.eq.s32.totalorder %s25, 3
      %p141 = por %p139, %p140
      %p142 = scmp.ne.s32.totalorder %s133, %s134
      %p143 = scmp.eq.s32.totalorder %s25, 0
      %p144 = por %p142, %p143
      %p145 = scmp.ne.s32.totalorder %s133, %s134
      %p146 = scmp.eq.s32.totalorder %s26, 3
      %p147 = por %p145, %p146
      %p149 = scmp.ne.s32.totalorder %s134, %s148
      %p150 = scmp.eq.s32.totalorder %s26, 0
      %p151 = por %p149, %p150
      %s153 = sadd.s32 %s152, 1
      %p156 = scmp.eq.s32.totalorder %s20, 3
      %p157 = scmp.ne.s32.totalorder %s152, %s154
      %p158 = scmp.eq.s32.totalorder %s20, 0
      %p159 = por %p157, %p158
      %p160 = scmp.ne.s32.totalorder %s152, %s154
      %p161 = scmp.eq.s32.totalorder %s25, 3
      %p162 = por %p160, %p161
      %p163 = scmp.ne.s32.totalorder %s154, %s155
      %p164 = scmp.eq.s32.totalorder %s25, 0
      %p165 = por %p163, %p164
      %p166 = scmp.ne.s32.totalorder %s154, %s155
      %p167 = scmp.eq.s32.totalorder %s26, 3
      %p168 = por %p166, %p167
      %p170 = scmp.ne.s32.totalorder %s155, %s169
      %p171 = scmp.eq.s32.totalorder %s26, 0
      %p172 = por %p170, %p171
      %s174 = sadd.s32 %s173, 1
      %p177 = scmp.eq.s32.totalorder %s20, 3
      %p178 = scmp.ne.s32.totalorder %s173, %s175
      %p179 = scmp.eq.s32.totalorder %s20, 0
      %p180 = por %p178, %p179
      %p181 = scmp.ne.s32.totalorder %s173, %s175
      %p182 = scmp.eq.s32.totalorder %s25, 3
      %p183 = por %p181, %p182
      %p184 = scmp.ne.s32.totalorder %s175, %s176
      %p185 = scmp.eq.s32.totalorder %s25, 0
      %p186 = por %p184, %p185
      %p187 = scmp.ne.s32.totalorder %s175, %s176
      %p188 = scmp.eq.s32.totalorder %s26, 3
      %p189 = por %p187, %p188
      %p191 = scmp.ne.s32.totalorder %s176, %s190
      %p192 = scmp.eq.s32.totalorder %s26, 0
      %p193 = por %p191, %p192
      %s195 = sadd.s32 %s194, 1
      %p198 = scmp.eq.s32.totalorder %s20, 3
      %p199 = scmp.ne.s32.totalorder %s194, %s196
      %p200 = scmp.eq.s32.totalorder %s20, 0
      %p201 = por %p199, %p200
      %p202 = scmp.ne.s32.totalorder %s194, %s196
      %p203 = scmp.eq.s32.totalorder %s25, 3
      %p204 = por %p202, %p203
      %p205 = scmp.ne.s32.totalorder %s196, %s197
      %p206 = scmp.eq.s32.totalorder %s25, 0
      %p207 = por %p205, %p206
      %p208 = scmp.ne.s32.totalorder %s196, %s197
      %p209 = scmp.eq.s32.totalorder %s26, 3
      %p210 = por %p208, %p209
      %p212 = scmp.ne.s32.totalorder %s197, %s211
      %p213 = scmp.eq.s32.totalorder %s26, 0
      %p214 = por %p212, %p213
      %s216 = sadd.s32 %s215, 1
      %p219 = scmp.eq.s32.totalorder %s20, 3
      %p220 = scmp.ne.s32.totalorder %s215, %s217
      %p221 = scmp.eq.s32.totalorder %s20, 0
      %p222 = por %p220, %p221
      %p223 = scmp.ne.s32.totalorder %s215, %s217
      %p224 = scmp.eq.s32.totalorder %s25, 3
      %p225 = por %p223, %p224
      %p226 = scmp.ne.s32.totalorder %s217, %s218
      %p227 = scmp.eq.s32.totalorder %s25, 0
      %p228 = por %p226, %p227
      %p229 = scmp.ne.s32.totalorder %s217, %s218
      %p230 = scmp.eq.s32.totalorder %s26, 3
      %p231 = por %p229, %p230
      %p233 = scmp.ne.s32.totalorder %s218, %s232
      %p234 = scmp.eq.s32.totalorder %s26, 0
      %p235 = por %p233, %p234
      %s237 = sadd.s32 %s236, 1
      %p240 = scmp.eq.s32.totalorder %s20, 3
      %p241 = scmp.ne.s32.totalorder %s236, %s238
      %p242 = scmp.eq.s32.totalorder %s20, 0
      %p243 = por %p241, %p242
      %p244 = scmp.ne.s32.totalorder %s236, %s238
      %p245 = scmp.eq.s32.totalorder %s25, 3
      %p246 = por %p244, %p245
      %p247 = scmp.ne.s32.totalorder %s238, %s239
      %p248 = scmp.eq.s32.totalorder %s25, 0
      %p249 = por %p247, %p248
      %p250 = scmp.ne.s32.totalorder %s238, %s239
      %p251 = scmp.eq.s32.totalorder %s26, 3
      %p252 = por %p250, %p251
      %p254 = scmp.ne.s32.totalorder %s239, %s253
      %p255 = scmp.eq.s32.totalorder %s26, 0
      %p256 = por %p254, %p255
      %s258 = sadd.s32 %s257, 1
      %p261 = scmp.eq.s32.totalorder %s20, 3
      %p262 = scmp.ne.s32.totalorder %s257, %s259
      %p263 = scmp.eq.s32.totalorder %s20, 0
      %p264 = por %p262, %p263
      %p265 = scmp.ne.s32.totalorder %s257, %s259
      %p266 = scmp.eq.s32.totalorder %s25, 3
      %p267 = por %p265, %p266
      %p268 = scmp.ne.s32.totalorder %s259, %s260
      %p269 = scmp.eq.s32.totalorder %s25, 0
      %p270 = por %p268, %p269
      %p271 = scmp.ne.s32.totalorder %s259, %s260
      %p272 = scmp.eq.s32.totalorder %s26, 3
      %p273 = por %p271, %p272
      %p275 = scmp.ne.s32.totalorder %s260, %s274
      %p276 = scmp.eq.s32.totalorder %s26, 0
      %p277 = por %p275, %p276
      %s278 = ssub.s32 %s27, %s39
      %s279 = ssub.s32 %s28, %s35
      %s280 = sor.u32 %s278, %s279
      %p281 = scmp.eq.s32.totalorder %s280, 0
      %s283 = sadd.s32 %s282, 1
      %s284 = scalar_select %p281, %s282, %s283
      %p287 = pneg %p281
      %p288 = scmp.eq.s32.totalorder %s20, 3
      %p289 = por %p287, %p288
      %p290 = scmp.ne.s32.totalorder %s282, %s285
      %p291 = scmp.eq.s32.totalorder %s20, 0
      %p292 = por %p290, %p291
      %p293 = scmp.ne.s32.totalorder %s282, %s285
      %p294 = scmp.eq.s32.totalorder %s25, 3
      %p295 = por %p293, %p294
      %p296 = scmp.ne.s32.totalorder %s285, %s286
      %p297 = scmp.eq.s32.totalorder %s25, 0
      %p298 = por %p296, %p297
      %p299 = scmp.ne.s32.totalorder %s285, %s286
      %p300 = scmp.eq.s32.totalorder %s26, 3
      %p301 = por %p299, %p300
      %p303 = scmp.ne.s32.totalorder %s286, %s302
      %p304 = scmp.eq.s32.totalorder %s26, 0
      %p305 = por %p303, %p304
      %p306 = scmp.le.s32.totalorder 1, %s20
      %p307 = scmp.lt.s32.totalorder %s20, 5
      %p308 = pnand %p306, %p307
      %p309 = pneg %p308
      // Predicated region
      $region9: #{tpu_custom_call.1} parent=5 // pred_check
        _
      $region10: #{tpu_custom_call.1} parent=5 // pred_check_branch
        %311 = sbr.rel (%p308) target = $region12
      $region11: #{tpu_custom_call.1} parent=5 // pred_region
        %s312 = ssub.s32 %s20, 1
        // Predicated region
        $region13: #{tpu_custom_call.1} parent=11 // pred_check
          %p313 = pneg %p81
        $region14: #{tpu_custom_call.1} parent=11 // pred_check_branch
          %315 = sbr.rel (%p313) target = $region16
        $region15: #{tpu_custom_call.1} parent=11 // pred_region
          _
        $region16: #{tpu_custom_call.1} parent=11 // pred_fallthru
          _
        // Predicated region
        $region17: #{tpu_custom_call.1} parent=11 // pred_check
          %p316 = pneg %p102
        $region18: #{tpu_custom_call.1} parent=11 // pred_check_branch
          %318 = sbr.rel (%p316) target = $region20
        $region19: #{tpu_custom_call.1} parent=11 // pred_region
          _
        $region20: #{tpu_custom_call.1} parent=11 // pred_fallthru
          _
        // Predicated region
        $region21: #{tpu_custom_call.1} parent=11 // pred_check
          %p319 = pneg %p123
        $region22: #{tpu_custom_call.1} parent=11 // pred_check_branch
          %321 = sbr.rel (%p319) target = $region24
        $region23: #{tpu_custom_call.1} parent=11 // pred_region
          _
        $region24: #{tpu_custom_call.1} parent=11 // pred_fallthru
          _
        // Predicated region
        $region25: #{tpu_custom_call.1} parent=11 // pred_check
          %p322 = pneg %p144
        $region26: #{tpu_custom_call.1} parent=11 // pred_check_branch
          %324 = sbr.rel (%p322) target = $region28
        $region27: #{tpu_custom_call.1} parent=11 // pred_region
          _
        $region28: #{tpu_custom_call.1} parent=11 // pred_fallthru
          _
        // Predicated region
        $region29: #{tpu_custom_call.1} parent=11 // pred_check
          %p325 = pneg %p165
        $region30: #{tpu_custom_call.1} parent=11 // pred_check_branch
          %327 = sbr.rel (%p325) target = $region32
        $region31: #{tpu_custom_call.1} parent=11 // pred_region
          _
        $region32: #{tpu_custom_call.1} parent=11 // pred_fallthru
          _
        // Predicated region
        $region33: #{tpu_custom_call.1} parent=11 // pred_check
          %p328 = pneg %p186
        $region34: #{tpu_custom_call.1} parent=11 // pred_check_branch
          %330 = sbr.rel (%p328) target = $region36
        $region35: #{tpu_custom_call.1} parent=11 // pred_region
          _
        $region36: #{tpu_custom_call.1} parent=11 // pred_fallthru
          _
        // Predicated region
        $region37: #{tpu_custom_call.1} parent=11 // pred_check
          %p331 = pneg %p207
        $region38: #{tpu_custom_call.1} parent=11 // pred_check_branch
          %333 = sbr.rel (%p331) target = $region40
        $region39: #{tpu_custom_call.1} parent=11 // pred_region
          _
        $region40: #{tpu_custom_call.1} parent=11 // pred_fallthru
          _
        // Predicated region
        $region41: #{tpu_custom_call.1} parent=11 // pred_check
          %p334 = pneg %p228
        $region42: #{tpu_custom_call.1} parent=11 // pred_check_branch
          %336 = sbr.rel (%p334) target = $region44
        $region43: #{tpu_custom_call.1} parent=11 // pred_region
          _
        $region44: #{tpu_custom_call.1} parent=11 // pred_fallthru
          _
        // Predicated region
        $region45: #{tpu_custom_call.1} parent=11 // pred_check
          %p337 = pneg %p249
        $region46: #{tpu_custom_call.1} parent=11 // pred_check_branch
          %339 = sbr.rel (%p337) target = $region48
        $region47: #{tpu_custom_call.1} parent=11 // pred_region
          _
        $region48: #{tpu_custom_call.1} parent=11 // pred_fallthru
          _
        // Predicated region
        $region49: #{tpu_custom_call.1} parent=11 // pred_check
          %p340 = pneg %p270
        $region50: #{tpu_custom_call.1} parent=11 // pred_check_branch
          %342 = sbr.rel (%p340) target = $region52
        $region51: #{tpu_custom_call.1} parent=11 // pred_region
          _
        $region52: #{tpu_custom_call.1} parent=11 // pred_fallthru
          _
      $region12: #{tpu_custom_call.1} parent=5 // pred_fallthru
        _
      %p343 = scmp.lt.s32.totalorder %s20, 4
      // Predicated region
      $region53: #{tpu_custom_call.1} parent=5 // pred_check
        %p344 = pneg %p343
      $region54: #{tpu_custom_call.1} parent=5 // pred_check_branch
        %346 = sbr.rel (%p344) target = $region56
      $region55: #{tpu_custom_call.1} parent=5 // pred_region
        // Predicated region
        $region57: #{tpu_custom_call.1} parent=55 // pred_check
          %p347 = pneg %p54
        $region58: #{tpu_custom_call.1} parent=55 // pred_check_branch
          %349 = sbr.rel (%p347) target = $region60
        $region59: #{tpu_custom_call.1} parent=55 // pred_region
          %p350 = scmp.lt.s32.totalorder %s27, 1
          %s351 = scalar_select %p350, %s27, 1
          %p352 = scmp.lt.s32.totalorder %s28, 1
          %s353 = scalar_select %p352, %s28, 1
          %s354 = smul.addr %s351, 2
          %s355 = sadd.s32 %s353, %s354
          %s356 = smul.addr %s355, 8
          %s357 = scalar_lea.vmem %s0, %s356
        $region60: #{tpu_custom_call.1} parent=55 // pred_fallthru
          _
      $region56: #{tpu_custom_call.1} parent=5 // pred_fallthru
        _
      %p358 = scmp.le.s32.totalorder 1, %s20
      %p359 = scmp.lt.s32.totalorder %s20, 5
      %p360 = pnand %p358, %p359
      %p361 = pneg %p360
      // Predicated region
      $region61: #{tpu_custom_call.1} parent=5 // pred_check
        _
      $region62: #{tpu_custom_call.1} parent=5 // pred_check_branch
        %363 = sbr.rel (%p360) target = $region64
      $region63: #{tpu_custom_call.1} parent=5 // pred_region
        %s364 = ssub.s32 %s20, 1
        %p365 = scmp.lt.s32.totalorder %s29, 1
        %s366 = scalar_select %p365, %s29, 1
        %p367 = scmp.lt.s32.totalorder %s30, 1
        %s368 = scalar_select %p367, %s30, 1
        %s369 = smul.addr %s366, 2
        %s370 = sadd.s32 %s368, %s369
        %s371 = smul.addr %s370, 8
        %s372 = scalar_lea.vmem %s0, %s371
        %p373 = pneg %p60
        %p374 = pneg %p57
        %p375 = pneg %p81
        %p376 = pneg %p78
        %p377 = pneg %p102
        %p378 = pneg %p99
        %p379 = pneg %p123
        %p380 = pneg %p120
        %p381 = pneg %p144
        %p382 = pneg %p141
        %p383 = pneg %p165
        %p384 = pneg %p162
        %p385 = pneg %p186
        %p386 = pneg %p183
        %p387 = pneg %p207
        %p388 = pneg %p204
        %p389 = pneg %p228
        %p390 = pneg %p225
        %p391 = pneg %p249
        %p392 = pneg %p246
        %p393 = pneg %p270
        %p394 = pneg %p267
        %p395 = pneg %p298
        %p396 = pneg %p295
        %s397 = sand.u32 %s285, 1
        %s398 = scalar_lea.sflag [#allocation7], %s397
        %s399 = sand.u32 %s285, 1
        %s400 = smul.addr %s399, 8
        %s401 = scalar_lea.vmem [#allocation6], %s400
        %p402 = scmp.lt.s32.totalorder %s29, 1
        %s403 = scalar_select %p402, %s29, 1
        %p404 = scmp.lt.s32.totalorder %s30, 1
        %s405 = scalar_select %p404, %s30, 1
        %s406 = smul.addr %s403, 2
        %s407 = sadd.s32 %s405, %s406
        %s408 = smul.addr %s407, 8
        %s409 = scalar_lea.vmem %s0, %s408
        %p410 = scmp.eq.s32.totalorder %s30, 0
        // Predicated region
        $region65: #{tpu_custom_call.1} parent=63 // pred_check
          %p411 = pneg %p410
        $region66: #{tpu_custom_call.1} parent=63 // pred_check_branch
          %413 = sbr.rel (%p411) target = $region68
        $region67: #{tpu_custom_call.1} parent=63 // pred_region
          %vm414 = vcmask 518144
          %415 = vst.msk [vmem:[#allocation2] sm:$0x7] %vm414, 0.0
          %vm416 = vcmask 523264
          %417 = vst.msk [vmem:[#allocation3] sm:$0xff] %vm416, 0.0
          %418 = vst.msk [vmem:[#allocation3 + $0x8] sm:$0xff] %vm416, 0.0
        $region68: #{tpu_custom_call.1} parent=63 // pred_fallthru
          _
        %v419 = vld [vmem:[%s409] sm:$0xff]
        %v420 = vld [vmem:[%s1] sm:$0xff]
        %v421 = vld [vmem:[%s1 + $0x8] sm:$0xff]
        %v422 = vld [vmem:[%s1 + $0x10] sm:$0xff]
        %v423 = vld [vmem:[%s1 + $0x18] sm:$0xff]
        %vm424 = vcmask 261120
        %v426 = vsel %vm424, %v419, 0
        %428 = vmatpush.msra.mxu0 0.0
        %429 = vmatpush.msra.mxu0 0.0
        %430 = vmatpush.msra.mxu0 0.0
        %431 = vmatpush.msra.mxu0 0.0
        %432 = vmatpush.msra.mxu0 0.0
        %433 = vmatpush.msra.mxu0 0.0
        %434 = vmatpush.msra.mxu0 0.0
        %435 = vmatpush.msra.mxu0 0.0
        %436 = vmatpush.msra.mxu0 0.0
        %437 = vmatpush.msra.mxu0 0.0
        %438 = vmatpush.msra.mxu0 0.0
        %439 = vmatpush.msra.mxu0 0.0
        %440 = vmatpush.msra.mxu0 %v423
        %441 = vmatpush.msra.mxu0 %v422
        %442 = vmatpush.msra.mxu0 %v421
        %443 = vmatpush.msra.mxu0 %v420
        %444 = vmatmul.f32.gmra.mxu0 %v426
        %v445 = vpop.f32.mrf.mxu0
        %v446 = vadd.f32 0.0, %v445
        %447 = vdwg.mxu0
        %v448 = vld [vmem:[%s2] sm:$0xff]
        %v449 = vld [vmem:[%s2 + $0x8] sm:$0xff]
        %v450 = vld [vmem:[%s2 + $0x10] sm:$0xff]
        %v451 = vld [vmem:[%s2 + $0x18] sm:$0xff]
        %452 = vmatpush.msra.mxu0 0.0
        %453 = vmatpush.msra.mxu0 0.0
        %454 = vmatpush.msra.mxu0 0.0
        %455 = vmatpush.msra.mxu0 0.0
        %456 = vmatpush.msra.mxu0 0.0
        %457 = vmatpush.msra.mxu0 0.0
        %458 = vmatpush.msra.mxu0 0.0
        %459 = vmatpush.msra.mxu0 0.0
        %460 = vmatpush.msra.mxu0 0.0
        %461 = vmatpush.msra.mxu0 0.0
        %462 = vmatpush.msra.mxu0 0.0
        %463 = vmatpush.msra.mxu0 0.0
        %464 = vmatpush.msra.mxu0 %v451
        %465 = vmatpush.msra.mxu0 %v450
        %466 = vmatpush.msra.mxu0 %v449
        %467 = vmatpush.msra.mxu0 %v448
        %468 = vmatmul.f32.gmra.mxu0 %v426
        %v469 = vpop.f32.mrf.mxu0
        %v470 = vadd.f32 0.0, %v469
        %471 = vdwg.mxu0
        %v472 = vld [vmem:[#allocation2] sm:$0x7]
        %v474 = vrot.slane %v446, 5
        %vm476 = vcmask 1042432
        %v477 = vsel %vm476, %v472, %v474
        %v478 = vld [vmem:[%s4] sm:$0x1]
        %v479 = vld [vmem:[%s3] sm:$0x1]
        %v480 = vperm.slane %v479, 0
        %v481 = vmul.f32 %v480, %v477
        %v483 = vperm.slane %v478, 0
        %v485 = vadd.f32 %v483, %v481
        %v486 = vld [vmem:[%s3 + $0x1] sm:$0x1]
        %v487 = vperm.slane %v486, 0
        %v488 = vmul.f32 %v487, %v477
        %v489 = vmul.f32 %v487, %v474
        %vm492 = vcmask 1046528
        %v493 = vrot.slane %v488, 1
        %v494 = vrot.slane %v489, 1
        %v495 = vsel %vm492, %v493, %v494
        %v497 = vadd.f32 %v485, %v495
        %v498 = vld [vmem:[%s3 + $0x2] sm:$0x1]
        %v499 = vperm.slane %v498, 0
        %v500 = vmul.f32 %v499, %v477
        %v501 = vmul.f32 %v499, %v474
        %vm504 = vcmask 1045504
        %v505 = vrot.slane %v500, 2
        %v506 = vrot.slane %v501, 2
        %v507 = vsel %vm504, %v505, %v506
        %v509 = vadd.f32 %v497, %v507
        %v510 = vld [vmem:[%s3 + $0x3] sm:$0x1]
        %v511 = vperm.slane %v510, 0
        %v512 = vmul.f32 %v511, %v477
        %v513 = vmul.f32 %v511, %v474
        %vm516 = vcmask 1044480
        %v517 = vrot.slane %v512, 3
        %v518 = vrot.slane %v513, 3
        %v519 = vsel %vm516, %v517, %v518
        %v521 = vadd.f32 %v509, %v519
        %vm522 = vcmask 523269
        %523 = vst.msk [vmem:[#allocation2 - $0x5] sm:$0xe0] %vm522, %v446
        %v524 = vxor.u32 %v521, 2147483648
        %v525 = vmul.f32 %v524, 1.442695
        %v526 = vpow.pop %v525
        %v527 = vadd.f32 %v526, 1.0
        %v528 = vrcp.pop %v527
        %v529 = vmul.f32 %v527, %v528
        %v530 = vsub.f32 1.0, %v529
        %v531 = vmul.f32 %v528, %v530
        %v532 = vadd.f32 %v528, %v531
        %vm533 = vweird.f32 %v527
        %vm534 = vweird.f32 %v528
        %vm535 = vmor %vm533, %vm534
        %v536 = vsel %vm535, %v528, %v532
        %v537 = vand.u32 2147483647, %v527
        %vm538 = vcmp.eq.f32.partialorder %v537, 8.507059e+37
        %v539 = vand.u32 %v527, 2147483648
        %v540 = vor.u32 1.1754944e-38, %v539
        %v541 = vsel %vm538, %v540, %v536
        %v542 = vmul.f32 1.0, %v541
        %v543 = vmul.f32 %v521, %v542
        %v544 = vld [vmem:[%s5] sm:$0xff]
        %v545 = vld [vmem:[%s5 + $0x8] sm:$0xff]
        %v546 = vld [vmem:[%s5 + $0x10] sm:$0xff]
        %v547 = vld [vmem:[%s5 + $0x18] sm:$0xff]
        %v548 = vld [vmem:[%s5 + $0x20] sm:$0xff]
        %v549 = vld [vmem:[%s5 + $0x28] sm:$0xff]
        %v550 = vld [vmem:[%s5 + $0x30] sm:$0xff]
        %v551 = vld [vmem:[%s5 + $0x38] sm:$0xff]
        %vm552 = vcmask 523264
        %v554 = vsel %vm552, %v543, 0
        %556 = vmatpush.msra.mxu0 0.0
        %557 = vmatpush.msra.mxu0 0.0
        %558 = vmatpush.msra.mxu0 0.0
        %559 = vmatpush.msra.mxu0 0.0
        %560 = vmatpush.msra.mxu0 0.0
        %561 = vmatpush.msra.mxu0 0.0
        %562 = vmatpush.msra.mxu0 0.0
        %563 = vmatpush.msra.mxu0 0.0
        %564 = vmatpush.msra.mxu0 %v551
        %565 = vmatpush.msra.mxu0 %v550
        %566 = vmatpush.msra.mxu0 %v549
        %567 = vmatpush.msra.mxu0 %v548
        %568 = vmatpush.msra.mxu0 %v547
        %569 = vmatpush.msra.mxu0 %v546
        %570 = vmatpush.msra.mxu0 %v545
        %571 = vmatpush.msra.mxu0 %v544
        %572 = vmatmul.f32.gmra.mxu0 %v554
        %v573 = vpop.f32.mrf.mxu0
        %v574 = vadd.f32 0.0, %v573
        %575 = vdwg.mxu0
        %v576 = vld [vmem:[%s6] sm:$0x3]
        %v577 = vld [vmem:[%s7] sm:$0x1]
        %v579 = vperm.slane %v577, 0
        %vm581 = vcmask 15360
        %v583 = vsel %vm581, %v574, 0
        %vm585 = vcmask 1041408
        %v587 = vsel %vm585, %v576, 0
        %589 = vmatpush.msra.mxu0 0.0
        %590 = vmatpush.msra.mxu0 0.0
        %591 = vmatpush.msra.mxu0 0.0
        %592 = vmatpush.msra.mxu0 0.0
        %593 = vmatpush.msra.mxu0 0.0
        %594 = vmatpush.msra.mxu0 0.0
        %595 = vmatpush.msra.mxu0 0.0
        %596 = vmatpush.msra.mxu0 0.0
        %597 = vmatpush.msra.mxu0 0.0
        %598 = vmatpush.msra.mxu0 0.0
        %599 = vmatpush.msra.mxu0 0.0
        %600 = vmatpush.msra.mxu0 0.0
        %601 = vmatpush.msra.mxu0 0.0
        %602 = vmatpush.msra.mxu0 0.0
        %603 = vmatpush.msra.mxu0 0.0
        %604 = vmatpush.msra.mxu0 %v587
        %605 = vmatmul.f32.gmra.mxu0 %v583
        %v606 = vpop.f32.mrf.mxu0
        %v607 = vadd.f32 %v579, %v606
        %608 = vdwg.mxu0
        %v609 = vmax.f32 %v607, 0.0
        %v610 = vand.u32 2147483647, %v607
        %v611 = vsub.f32 0.0, %v610
        %v612 = vmul.f32 %v611, 1.442695
        %v613 = vpow.pop %v612
        %v614 = vadd.f32 %v613, 1.0
        %v615 = vlog2.pop %v614
        %v616 = vmul.f32 %v615, 0.6931472
        %v617 = vadd.f32 %v609, %v616
        %v618 = vld [vmem:[%s8] sm:$0xff]
        %v619 = vld [vmem:[%s8 + $0x8] sm:$0xff]
        %v621 = vrot.slane %v617, 1
        %v622 = vrot.slane %v617, 2
        %v623 = vrot.slane %v617, 3
        %v624 = vrot.slane %v617, 4
        %v625 = vrot.slane %v617, 5
        %v626 = vrot.slane %v617, 6
        %v627 = vrot.slane %v617, 7
        %v628 = vperm.slane %v617, 0
        %v629 = vperm.slane %v621, 0
        %v630 = vperm.slane %v622, 0
        %v631 = vperm.slane %v623, 0
        %v632 = vperm.slane %v624, 0
        %v633 = vperm.slane %v625, 0
        %v634 = vperm.slane %v626, 0
        %v635 = vperm.slane %v627, 0
        %v644 = vmul.f32 %v628, %v618
        %v645 = vmul.f32 %v628, %v619
        %v646 = vmul.f32 %v629, %v618
        %v647 = vmul.f32 %v629, %v619
        %v648 = vmul.f32 %v630, %v618
        %v649 = vmul.f32 %v630, %v619
        %v650 = vmul.f32 %v631, %v618
        %v651 = vmul.f32 %v631, %v619
        %v652 = vmul.f32 %v632, %v618
        %v653 = vmul.f32 %v632, %v619
        %v654 = vmul.f32 %v633, %v618
        %v655 = vmul.f32 %v633, %v619
        %v656 = vmul.f32 %v634, %v618
        %v657 = vmul.f32 %v634, %v619
        %v658 = vmul.f32 %v635, %v618
        %v659 = vmul.f32 %v635, %v619
        %v660 = vmul.f32 %v644, 1.442695
        %v661 = vpow.pop %v660
        %v662 = vmul.f32 %v645, 1.442695
        %v663 = vpow.pop %v662
        %v664 = vmul.f32 %v646, 1.442695
        %v665 = vpow.pop %v664
        %v666 = vmul.f32 %v647, 1.442695
        %v667 = vpow.pop %v666
        %v668 = vmul.f32 %v648, 1.442695
        %v669 = vpow.pop %v668
        %v670 = vmul.f32 %v649, 1.442695
        %v671 = vpow.pop %v670
        %v672 = vmul.f32 %v650, 1.442695
        %v673 = vpow.pop %v672
        %v674 = vmul.f32 %v651, 1.442695
        %v675 = vpow.pop %v674
        %v676 = vmul.f32 %v652, 1.442695
        %v677 = vpow.pop %v676
        %v678 = vmul.f32 %v653, 1.442695
        %v679 = vpow.pop %v678
        %v680 = vmul.f32 %v654, 1.442695
        %v681 = vpow.pop %v680
        %v682 = vmul.f32 %v655, 1.442695
        %v683 = vpow.pop %v682
        %v684 = vmul.f32 %v656, 1.442695
        %v685 = vpow.pop %v684
        %v686 = vmul.f32 %v657, 1.442695
        %v687 = vpow.pop %v686
        %v688 = vmul.f32 %v658, 1.442695
        %v689 = vpow.pop %v688
        %v690 = vmul.f32 %v659, 1.442695
        %v691 = vpow.pop %v690
        %692 = vst.msk [vmem:[#allocation4] sm:$0xff] %vm552, %v661
        %693 = vst.msk [vmem:[#allocation4 + $0x8] sm:$0xff] %vm552, %v663
        %694 = vst.msk [vmem:[#allocation4 + $0x10] sm:$0xff] %vm552, %v665
        %695 = vst.msk [vmem:[#allocation4 + $0x18] sm:$0xff] %vm552, %v667
        %696 = vst.msk [vmem:[#allocation4 + $0x20] sm:$0xff] %vm552, %v669
        %697 = vst.msk [vmem:[#allocation4 + $0x28] sm:$0xff] %vm552, %v671
        %698 = vst.msk [vmem:[#allocation4 + $0x30] sm:$0xff] %vm552, %v673
        %699 = vst.msk [vmem:[#allocation4 + $0x38] sm:$0xff] %vm552, %v675
        %700 = vst.msk [vmem:[#allocation4 + $0x40] sm:$0xff] %vm552, %v677
        %701 = vst.msk [vmem:[#allocation4 + $0x48] sm:$0xff] %vm552, %v679
        %702 = vst.msk [vmem:[#allocation4 + $0x50] sm:$0xff] %vm552, %v681
        %703 = vst.msk [vmem:[#allocation4 + $0x58] sm:$0xff] %vm552, %v683
        %704 = vst.msk [vmem:[#allocation4 + $0x60] sm:$0xff] %vm552, %v685
        %705 = vst.msk [vmem:[#allocation4 + $0x68] sm:$0xff] %vm552, %v687
        %706 = vst.msk [vmem:[#allocation4 + $0x70] sm:$0xff] %vm552, %v689
        %707 = vst.msk [vmem:[#allocation4 + $0x78] sm:$0xff] %vm552, %v691
        %v708 = vmul.f32 %v617, %v543
        %v710 = vrot.slane %v708, 1
        %v711 = vrot.slane %v708, 2
        %v712 = vrot.slane %v708, 3
        %v713 = vrot.slane %v708, 4
        %v714 = vrot.slane %v708, 5
        %v715 = vrot.slane %v708, 6
        %v716 = vrot.slane %v708, 7
        %v717 = vperm.slane %v574, 0
        %v718 = vlaneseq
        %v719 = vshrl.u32 %v718, 7
        %v720 = vadd.s32 %v719, 2
        %721 = vset.pattern.permute.xlu0 %v720
        %722 = vperm.xlu0 %721, %v717
        %v723 = vpop.permute.xlu0 %722
        %v724 = vlaneseq
        %v725 = vshrl.u32 %v724, 7
        %v726 = vadd.s32 %v725, 10
        %727 = vset.pattern.permute.xlu0 %v726
        %728 = vperm.xlu0 %727, %v717
        %v729 = vpop.permute.xlu0 %728
        %v730 = vperm.slane %v574, 1
        %v731 = vlaneseq
        %v732 = vshrl.u32 %v731, 7
        %v733 = vadd.s32 %v732, 2
        %734 = vset.pattern.permute.xlu0 %v733
        %735 = vperm.xlu0 %734, %v730
        %v736 = vpop.permute.xlu0 %735
        %v737 = vlaneseq
        %v738 = vshrl.u32 %v737, 7
        %v739 = vadd.s32 %v738, 10
        %740 = vset.pattern.permute.xlu0 %v739
        %741 = vperm.xlu0 %740, %v730
        %v742 = vpop.permute.xlu0 %741
        %v743 = vperm.slane %v574, 2
        %v744 = vlaneseq
        %v745 = vshrl.u32 %v744, 7
        %v746 = vadd.s32 %v745, 2
        %747 = vset.pattern.permute.xlu0 %v746
        %748 = vperm.xlu0 %747, %v743
        %v749 = vpop.permute.xlu0 %748
        %v750 = vlaneseq
        %v751 = vshrl.u32 %v750, 7
        %v752 = vadd.s32 %v751, 10
        %753 = vset.pattern.permute.xlu0 %v752
        %754 = vperm.xlu0 %753, %v743
        %v755 = vpop.permute.xlu0 %754
        %v756 = vperm.slane %v574, 3
        %v757 = vlaneseq
        %v758 = vshrl.u32 %v757, 7
        %v759 = vadd.s32 %v758, 2
        %760 = vset.pattern.permute.xlu0 %v759
        %761 = vperm.xlu0 %760, %v756
        %v762 = vpop.permute.xlu0 %761
        %v763 = vlaneseq
        %v764 = vshrl.u32 %v763, 7
        %v765 = vadd.s32 %v764, 10
        %766 = vset.pattern.permute.xlu0 %v765
        %767 = vperm.xlu0 %766, %v756
        %v768 = vpop.permute.xlu0 %767
        %v769 = vperm.slane %v574, 4
        %v770 = vlaneseq
        %v771 = vshrl.u32 %v770, 7
        %v772 = vadd.s32 %v771, 2
        %773 = vset.pattern.permute.xlu0 %v772
        %774 = vperm.xlu0 %773, %v769
        %v775 = vpop.permute.xlu0 %774
        %v776 = vlaneseq
        %v777 = vshrl.u32 %v776, 7
        %v778 = vadd.s32 %v777, 10
        %779 = vset.pattern.permute.xlu0 %v778
        %780 = vperm.xlu0 %779, %v769
        %v781 = vpop.permute.xlu0 %780
        %v782 = vperm.slane %v574, 5
        %v783 = vlaneseq
        %v784 = vshrl.u32 %v783, 7
        %v785 = vadd.s32 %v784, 2
        %786 = vset.pattern.permute.xlu0 %v785
        %787 = vperm.xlu0 %786, %v782
        %v788 = vpop.permute.xlu0 %787
        %v789 = vlaneseq
        %v790 = vshrl.u32 %v789, 7
        %v791 = vadd.s32 %v790, 10
        %792 = vset.pattern.permute.xlu0 %v791
        %793 = vperm.xlu0 %792, %v782
        %v794 = vpop.permute.xlu0 %793
        %v795 = vperm.slane %v574, 6
        %v796 = vlaneseq
        %v797 = vshrl.u32 %v796, 7
        %v798 = vadd.s32 %v797, 2
        %799 = vset.pattern.permute.xlu0 %v798
        %800 = vperm.xlu0 %799, %v795
        %v801 = vpop.permute.xlu0 %800
        %v802 = vlaneseq
        %v803 = vshrl.u32 %v802, 7
        %v804 = vadd.s32 %v803, 10
        %805 = vset.pattern.permute.xlu0 %v804
        %806 = vperm.xlu0 %805, %v795
        %v807 = vpop.permute.xlu0 %806
        %v808 = vperm.slane %v574, 7
        %v809 = vlaneseq
        %v810 = vshrl.u32 %v809, 7
        %v811 = vadd.s32 %v810, 2
        %812 = vset.pattern.permute.xlu0 %v811
        %813 = vperm.xlu0 %812, %v808
        %v814 = vpop.permute.xlu0 %813
        %v815 = vlaneseq
        %v816 = vshrl.u32 %v815, 7
        %v817 = vadd.s32 %v816, 10
        %818 = vset.pattern.permute.xlu0 %v817
        %819 = vperm.xlu0 %818, %v808
        %v820 = vpop.permute.xlu0 %819
        %v821 = vperm.slane %v708, 0
        %v822 = vperm.slane %v710, 0
        %v823 = vperm.slane %v711, 0
        %v824 = vperm.slane %v712, 0
        %v825 = vperm.slane %v713, 0
        %v826 = vperm.slane %v714, 0
        %v827 = vperm.slane %v715, 0
        %v828 = vperm.slane %v716, 0
        %v837 = vmul.f32 %v821, %v723
        %v838 = vmul.f32 %v821, %v729
        %v839 = vmul.f32 %v822, %v736
        %v840 = vmul.f32 %v822, %v742
        %v841 = vmul.f32 %v823, %v749
        %v842 = vmul.f32 %v823, %v755
        %v843 = vmul.f32 %v824, %v762
        %v844 = vmul.f32 %v824, %v768
        %v845 = vmul.f32 %v825, %v775
        %v846 = vmul.f32 %v825, %v781
        %v847 = vmul.f32 %v826, %v788
        %v848 = vmul.f32 %v826, %v794
        %v849 = vmul.f32 %v827, %v801
        %v850 = vmul.f32 %v827, %v807
        %v851 = vmul.f32 %v828, %v814
        %v852 = vmul.f32 %v828, %v820
        %853 = vst.msk [vmem:[#allocation5] sm:$0xff] %vm552, %v837
        %854 = vst.msk [vmem:[#allocation5 + $0x8] sm:$0xff] %vm552, %v838
        %855 = vst.msk [vmem:[#allocation5 + $0x10] sm:$0xff] %vm552, %v839
        %856 = vst.msk [vmem:[#allocation5 + $0x18] sm:$0xff] %vm552, %v840
        %857 = vst.msk [vmem:[#allocation5 + $0x20] sm:$0xff] %vm552, %v841
        %858 = vst.msk [vmem:[#allocation5 + $0x28] sm:$0xff] %vm552, %v842
        %859 = vst.msk [vmem:[#allocation5 + $0x30] sm:$0xff] %vm552, %v843
        %860 = vst.msk [vmem:[#allocation5 + $0x38] sm:$0xff] %vm552, %v844
        %861 = vst.msk [vmem:[#allocation5 + $0x40] sm:$0xff] %vm552, %v845
        %862 = vst.msk [vmem:[#allocation5 + $0x48] sm:$0xff] %vm552, %v846
        %863 = vst.msk [vmem:[#allocation5 + $0x50] sm:$0xff] %vm552, %v847
        %864 = vst.msk [vmem:[#allocation5 + $0x58] sm:$0xff] %vm552, %v848
        %865 = vst.msk [vmem:[#allocation5 + $0x60] sm:$0xff] %vm552, %v849
        %866 = vst.msk [vmem:[#allocation5 + $0x68] sm:$0xff] %vm552, %v850
        %867 = vst.msk [vmem:[#allocation5 + $0x70] sm:$0xff] %vm552, %v851
        %868 = vst.msk [vmem:[#allocation5 + $0x78] sm:$0xff] %vm552, %v852
        %v869 = vld [vmem:[#allocation3] sm:$0xff]
        %v870 = vld [vmem:[#allocation3 + $0x8] sm:$0xff]
        loop: start=0, step=1, limit=8
        $region69: #{tpu_custom_call.1} parent=63 // loop_pre_header
          _
        $region70: #{tpu_custom_call.1} parent=63 // loop_header
          %s872 = sphi 0, %s876
          %p873 = scmp.ge.s32.totalorder %s872, 8
          %v877 = vphi %v869, %v888
          %v878 = vphi %v870, %v889
        $region71: #{tpu_custom_call.1} parent=63 // loop_header_branch
          %875 = sbr.rel (%p873) target = $region75
        $region72: #{tpu_custom_call.1} parent=63 // loop_body
          %s879 = smul.u32 %s872, 16
          %s880 = scalar_lea.vmem [#allocation4], %s879
          %v881 = vld [vmem:[%s880] sm:$0xff]
          %v882 = vld [vmem:[%s880 + $0x8] sm:$0xff]
          %v883 = vmul.f32 %v881, %v877
          %v884 = vmul.f32 %v882, %v878
          %s885 = scalar_lea.vmem [#allocation5], %s879
          %v886 = vld [vmem:[%s885] sm:$0xff]
          %v887 = vld [vmem:[%s885 + $0x8] sm:$0xff]
          %v888 = vadd.f32 %v883, %v886
          %v889 = vadd.f32 %v884, %v887
          %890 = vst.msk [vmem:[%s885] sm:$0xff] %vm552, %v888
          %891 = vst.msk [vmem:[%s885 + $0x8] sm:$0xff] %vm552, %v889
        $region73: #{tpu_custom_call.1} parent=63 // loop_footer
          %s876 = sadd.s32 1, %s872
        $region74: #{tpu_custom_call.1} parent=63 // loop_footer_branch
          %871 = sbr.rel target = $region70
        $region75: #{tpu_custom_call.1} parent=63 // loop_exit
          _
        %892 = vst.msk [vmem:[#allocation3] sm:$0xff] %vm552, %v877
        %893 = vst.msk [vmem:[#allocation3 + $0x8] sm:$0xff] %vm552, %v878
        %v894 = vld [vmem:[#allocation5] sm:$0xff]
        %v895 = vld [vmem:[#allocation5 + $0x8] sm:$0xff]
        %v896 = vld [vmem:[#allocation5 + $0x10] sm:$0xff]
        %v897 = vld [vmem:[#allocation5 + $0x18] sm:$0xff]
        %v898 = vld [vmem:[#allocation5 + $0x20] sm:$0xff]
        %v899 = vld [vmem:[#allocation5 + $0x28] sm:$0xff]
        %v900 = vld [vmem:[#allocation5 + $0x30] sm:$0xff]
        %v901 = vld [vmem:[#allocation5 + $0x38] sm:$0xff]
        %v902 = vld [vmem:[#allocation5 + $0x40] sm:$0xff]
        %v903 = vld [vmem:[#allocation5 + $0x48] sm:$0xff]
        %v904 = vld [vmem:[#allocation5 + $0x50] sm:$0xff]
        %v905 = vld [vmem:[#allocation5 + $0x58] sm:$0xff]
        %v906 = vld [vmem:[#allocation5 + $0x60] sm:$0xff]
        %v907 = vld [vmem:[#allocation5 + $0x68] sm:$0xff]
        %v908 = vld [vmem:[#allocation5 + $0x70] sm:$0xff]
        %v909 = vld [vmem:[#allocation5 + $0x78] sm:$0xff]
        %v910 = vlaneseq
        %v911 = vshrl.u32 %v910, 7
        %v912 = vadd.s32 %v911, 18
        %913 = vset.pattern.permute.xlu0 %v912
        %914 = vperm.xlu0 %913, %v717
        %v915 = vpop.permute.xlu0 %914
        %v916 = vlaneseq
        %v917 = vshrl.u32 %v916, 7
        %v918 = vadd.s32 %v917, 26
        %919 = vset.pattern.permute.xlu0 %v918
        %920 = vperm.xlu0 %919, %v717
        %v921 = vpop.permute.xlu0 %920
        %v922 = vlaneseq
        %v923 = vshrl.u32 %v922, 7
        %v924 = vadd.s32 %v923, 18
        %925 = vset.pattern.permute.xlu0 %v924
        %926 = vperm.xlu0 %925, %v730
        %v927 = vpop.permute.xlu0 %926
        %v928 = vlaneseq
        %v929 = vshrl.u32 %v928, 7
        %v930 = vadd.s32 %v929, 26
        %931 = vset.pattern.permute.xlu0 %v930
        %932 = vperm.xlu0 %931, %v730
        %v933 = vpop.permute.xlu0 %932
        %v934 = vlaneseq
        %v935 = vshrl.u32 %v934, 7
        %v936 = vadd.s32 %v935, 18
        %937 = vset.pattern.permute.xlu0 %v936
        %938 = vperm.xlu0 %937, %v743
        %v939 = vpop.permute.xlu0 %938
        %v940 = vlaneseq
        %v941 = vshrl.u32 %v940, 7
        %v942 = vadd.s32 %v941, 26
        %943 = vset.pattern.permute.xlu0 %v942
        %944 = vperm.xlu0 %943, %v743
        %v945 = vpop.permute.xlu0 %944
        %v946 = vlaneseq
        %v947 = vshrl.u32 %v946, 7
        %v948 = vadd.s32 %v947, 18
        %949 = vset.pattern.permute.xlu0 %v948
        %950 = vperm.xlu0 %949, %v756
        %v951 = vpop.permute.xlu0 %950
        %v952 = vlaneseq
        %v953 = vshrl.u32 %v952, 7
        %v954 = vadd.s32 %v953, 26
        %955 = vset.pattern.permute.xlu0 %v954
        %956 = vperm.xlu0 %955, %v756
        %v957 = vpop.permute.xlu0 %956
        %v958 = vlaneseq
        %v959 = vshrl.u32 %v958, 7
        %v960 = vadd.s32 %v959, 18
        %961 = vset.pattern.permute.xlu0 %v960
        %962 = vperm.xlu0 %961, %v769
        %v963 = vpop.permute.xlu0 %962
        %v964 = vlaneseq
        %v965 = vshrl.u32 %v964, 7
        %v966 = vadd.s32 %v965, 26
        %967 = vset.pattern.permute.xlu0 %v966
        %968 = vperm.xlu0 %967, %v769
        %v969 = vpop.permute.xlu0 %968
        %v970 = vlaneseq
        %v971 = vshrl.u32 %v970, 7
        %v972 = vadd.s32 %v971, 18
        %973 = vset.pattern.permute.xlu0 %v972
        %974 = vperm.xlu0 %973, %v782
        %v975 = vpop.permute.xlu0 %974
        %v976 = vlaneseq
        %v977 = vshrl.u32 %v976, 7
        %v978 = vadd.s32 %v977, 26
        %979 = vset.pattern.permute.xlu0 %v978
        %980 = vperm.xlu0 %979, %v782
        %v981 = vpop.permute.xlu0 %980
        %v982 = vlaneseq
        %v983 = vshrl.u32 %v982, 7
        %v984 = vadd.s32 %v983, 18
        %985 = vset.pattern.permute.xlu0 %v984
        %986 = vperm.xlu0 %985, %v795
        %v987 = vpop.permute.xlu0 %986
        %v988 = vlaneseq
        %v989 = vshrl.u32 %v988, 7
        %v990 = vadd.s32 %v989, 26
        %991 = vset.pattern.permute.xlu0 %v990
        %992 = vperm.xlu0 %991, %v795
        %v993 = vpop.permute.xlu0 %992
        %v994 = vlaneseq
        %v995 = vshrl.u32 %v994, 7
        %v996 = vadd.s32 %v995, 18
        %997 = vset.pattern.permute.xlu0 %v996
        %998 = vperm.xlu0 %997, %v808
        %v999 = vpop.permute.xlu0 %998
        %v1000 = vlaneseq
        %v1001 = vshrl.u32 %v1000, 7
        %v1002 = vadd.s32 %v1001, 26
        %1003 = vset.pattern.permute.xlu0 %v1002
        %1004 = vperm.xlu0 %1003, %v808
        %v1005 = vpop.permute.xlu0 %1004
        %v1006 = vmul.f32 %v894, %v915
        %v1007 = vmul.f32 %v895, %v921
        %v1008 = vmul.f32 %v896, %v927
        %v1009 = vmul.f32 %v897, %v933
        %v1010 = vmul.f32 %v898, %v939
        %v1011 = vmul.f32 %v899, %v945
        %v1012 = vmul.f32 %v900, %v951
        %v1013 = vmul.f32 %v901, %v957
        %v1014 = vmul.f32 %v902, %v963
        %v1015 = vmul.f32 %v903, %v969
        %v1016 = vmul.f32 %v904, %v975
        %v1017 = vmul.f32 %v905, %v981
        %v1018 = vmul.f32 %v906, %v987
        %v1019 = vmul.f32 %v907, %v993
        %v1020 = vmul.f32 %v908, %v999
        %v1021 = vmul.f32 %v909, %v1005
        %v1022 = vsel %vm552, %v1006, 0.0
        %v1023 = vsel %vm552, %v1007, 0.0
        %v1024 = vadd.f32 %v1022, %v1023
        %v1025 = vrot.slane %v1024, 4
        %v1026 = vadd.f32 %v1024, %v1025
        %v1027 = vrot.slane %v1026, 2
        %v1028 = vadd.f32 %v1026, %v1027
        %v1029 = vrot.slane %v1028, 1
        %v1030 = vadd.f32 %v1028, %v1029
        %v1031 = vsel %vm552, %v1008, 0.0
        %v1032 = vsel %vm552, %v1009, 0.0
        %v1033 = vadd.f32 %v1031, %v1032
        %v1034 = vrot.slane %v1033, 4
        %v1035 = vadd.f32 %v1033, %v1034
        %v1036 = vrot.slane %v1035, 2
        %v1037 = vadd.f32 %v1035, %v1036
        %v1038 = vrot.slane %v1037, 1
        %v1039 = vadd.f32 %v1037, %v1038
        %v1040 = vsel %vm552, %v1010, 0.0
        %v1041 = vsel %vm552, %v1011, 0.0
        %v1042 = vadd.f32 %v1040, %v1041
        %v1043 = vrot.slane %v1042, 4
        %v1044 = vadd.f32 %v1042, %v1043
        %v1045 = vrot.slane %v1044, 2
        %v1046 = vadd.f32 %v1044, %v1045
        %v1047 = vrot.slane %v1046, 1
        %v1048 = vadd.f32 %v1046, %v1047
        %v1049 = vsel %vm552, %v1012, 0.0
        %v1050 = vsel %vm552, %v1013, 0.0
        %v1051 = vadd.f32 %v1049, %v1050
        %v1052 = vrot.slane %v1051, 4
        %v1053 = vadd.f32 %v1051, %v1052
        %v1054 = vrot.slane %v1053, 2
        %v1055 = vadd.f32 %v1053, %v1054
        %v1056 = vrot.slane %v1055, 1
        %v1057 = vadd.f32 %v1055, %v1056
        %v1058 = vsel %vm552, %v1014, 0.0
        %v1059 = vsel %vm552, %v1015, 0.0
        %v1060 = vadd.f32 %v1058, %v1059
        %v1061 = vrot.slane %v1060, 4
        %v1062 = vadd.f32 %v1060, %v1061
        %v1063 = vrot.slane %v1062, 2
        %v1064 = vadd.f32 %v1062, %v1063
        %v1065 = vrot.slane %v1064, 1
        %v1066 = vadd.f32 %v1064, %v1065
        %v1067 = vsel %vm552, %v1016, 0.0
        %v1068 = vsel %vm552, %v1017, 0.0
        %v1069 = vadd.f32 %v1067, %v1068
        %v1070 = vrot.slane %v1069, 4
        %v1071 = vadd.f32 %v1069, %v1070
        %v1072 = vrot.slane %v1071, 2
        %v1073 = vadd.f32 %v1071, %v1072
        %v1074 = vrot.slane %v1073, 1
        %v1075 = vadd.f32 %v1073, %v1074
        %v1076 = vsel %vm552, %v1018, 0.0
        %v1077 = vsel %vm552, %v1019, 0.0
        %v1078 = vadd.f32 %v1076, %v1077
        %v1079 = vrot.slane %v1078, 4
        %v1080 = vadd.f32 %v1078, %v1079
        %v1081 = vrot.slane %v1080, 2
        %v1082 = vadd.f32 %v1080, %v1081
        %v1083 = vrot.slane %v1082, 1
        %v1084 = vadd.f32 %v1082, %v1083
        %v1085 = vsel %vm552, %v1020, 0.0
        %v1086 = vsel %vm552, %v1021, 0.0
        %v1087 = vadd.f32 %v1085, %v1086
        %v1088 = vrot.slane %v1087, 4
        %v1089 = vadd.f32 %v1087, %v1088
        %v1090 = vrot.slane %v1089, 2
        %v1091 = vadd.f32 %v1089, %v1090
        %v1092 = vrot.slane %v1091, 1
        %v1093 = vadd.f32 %v1091, %v1092
        %v1094 = vld [vmem:[%s9] sm:$0x1]
        %v1096 = vperm.slane %v1094, 0
        %v1098 = vmul.f32 %v1096, %v543
        %v1100 = vrot.slane %v1098, 1
        %v1101 = vrot.slane %v1098, 2
        %v1102 = vrot.slane %v1098, 3
        %v1103 = vrot.slane %v1098, 4
        %v1104 = vrot.slane %v1098, 5
        %v1105 = vrot.slane %v1098, 6
        %v1106 = vrot.slane %v1098, 7
        %v1115 = vadd.f32 %v1030, %v1098
        %v1116 = vadd.f32 %v1039, %v1100
        %v1117 = vadd.f32 %v1048, %v1101
        %v1118 = vadd.f32 %v1057, %v1102
        %v1119 = vadd.f32 %v1066, %v1103
        %v1120 = vadd.f32 %v1075, %v1104
        %v1121 = vadd.f32 %v1084, %v1105
        %v1122 = vadd.f32 %v1093, %v1106
        %v1123 = vxor.u32 %v470, 2147483648
        %v1124 = vmul.f32 %v1123, 1.442695
        %v1125 = vpow.pop %v1124
        %v1126 = vadd.f32 %v1125, 1.0
        %v1127 = vrcp.pop %v1126
        %v1128 = vmul.f32 %v1126, %v1127
        %v1129 = vsub.f32 1.0, %v1128
        %v1130 = vmul.f32 %v1127, %v1129
        %v1131 = vadd.f32 %v1127, %v1130
        %vm1132 = vweird.f32 %v1126
        %vm1133 = vweird.f32 %v1127
        %vm1134 = vmor %vm1132, %vm1133
        %v1135 = vsel %vm1134, %v1127, %v1131
        %v1136 = vand.u32 2147483647, %v1126
        %vm1137 = vcmp.eq.f32.partialorder %v1136, 8.507059e+37
        %v1138 = vand.u32 %v1126, 2147483648
        %v1139 = vor.u32 1.1754944e-38, %v1138
        %v1140 = vsel %vm1137, %v1139, %v1135
        %v1141 = vmul.f32 1.0, %v1140
        %v1142 = vmul.f32 %v470, %v1141
        %v1144 = vrot.slane %v1142, 1
        %v1145 = vrot.slane %v1142, 2
        %v1146 = vrot.slane %v1142, 3
        %v1147 = vrot.slane %v1142, 4
        %v1148 = vrot.slane %v1142, 5
        %v1149 = vrot.slane %v1142, 6
        %v1150 = vrot.slane %v1142, 7
        %v1159 = vmul.f32 %v1115, %v1142
        %v1160 = vmul.f32 %v1116, %v1144
        %v1161 = vmul.f32 %v1117, %v1145
        %v1162 = vmul.f32 %v1118, %v1146
        %v1163 = vmul.f32 %v1119, %v1147
        %v1164 = vmul.f32 %v1120, %v1148
        %v1165 = vmul.f32 %v1121, %v1149
        %v1166 = vmul.f32 %v1122, %v1150
        %v1167 = vld [vmem:[%s10] sm:$0xff]
        %v1168 = vld [vmem:[%s10 + $0x8] sm:$0xff]
        %v1169 = vld [vmem:[%s10 + $0x10] sm:$0xff]
        %v1170 = vld [vmem:[%s10 + $0x18] sm:$0xff]
        %v1171 = vld [vmem:[%s10 + $0x20] sm:$0xff]
        %v1172 = vld [vmem:[%s10 + $0x28] sm:$0xff]
        %v1173 = vld [vmem:[%s10 + $0x30] sm:$0xff]
        %v1174 = vld [vmem:[%s10 + $0x38] sm:$0xff]
        %v1183 = vrot.slane %v1160, 7
        %vm1184 = vcmask 1041409
        %v1185 = vsel %vm1184, %v1183, %v1159
        %v1186 = vrot.slane %v1161, 6
        %vm1187 = vcmask 1042434
        %v1188 = vsel %vm1187, %v1186, %v1185
        %v1189 = vrot.slane %v1162, 5
        %vm1190 = vcmask 1043459
        %v1191 = vsel %vm1190, %v1189, %v1188
        %v1192 = vrot.slane %v1163, 4
        %vm1193 = vcmask 1044484
        %v1194 = vsel %vm1193, %v1192, %v1191
        %v1195 = vrot.slane %v1164, 3
        %vm1196 = vcmask 1045509
        %v1197 = vsel %vm1196, %v1195, %v1194
        %v1198 = vrot.slane %v1165, 2
        %vm1199 = vcmask 1046534
        %v1200 = vsel %vm1199, %v1198, %v1197
        %v1201 = vrot.slane %v1166, 1
        %vm1202 = vcmask 1047559
        %v1203 = vsel %vm1202, %v1201, %v1200
        %v1204 = vsel %vm552, %v1203, 0
        %1206 = vmatpush.msra.mxu0 0.0
        %1207 = vmatpush.msra.mxu0 0.0
        %1208 = vmatpush.msra.mxu0 0.0
        %1209 = vmatpush.msra.mxu0 0.0
        %1210 = vmatpush.msra.mxu0 0.0
        %1211 = vmatpush.msra.mxu0 0.0
        %1212 = vmatpush.msra.mxu0 0.0
        %1213 = vmatpush.msra.mxu0 0.0
        %1214 = vmatpush.msra.mxu0 %v1174
        %1215 = vmatpush.msra.mxu0 %v1173
        %1216 = vmatpush.msra.mxu0 %v1172
        %1217 = vmatpush.msra.mxu0 %v1171
        %1218 = vmatpush.msra.mxu0 %v1170
        %1219 = vmatpush.msra.mxu0 %v1169
        %1220 = vmatpush.msra.mxu0 %v1168
        %1221 = vmatpush.msra.mxu0 %v1167
        %1222 = vmatmul.f32.gmra.mxu0 %v1204
        %v1223 = vpop.f32.mrf.mxu0
        %v1224 = vadd.f32 0.0, %v1223
        %1225 = vdwg.mxu0
        %1226 = vst.msk [vmem:[%s401] sm:$0xff] %vm424, %v1224
        %s1227 = sand.u32 %s285, 1
        %s1228 = scalar_lea.sflag [#allocation7], %s1227
        %s1229 = sand.u32 %s285, 1
        %s1230 = smul.addr %s1229, 8
        %s1231 = scalar_lea.vmem [#allocation6], %s1230
        // Predicated region
        $region76: #{tpu_custom_call.1} parent=63 // pred_check
          %p1232 = pneg %p295
        $region77: #{tpu_custom_call.1} parent=63 // pred_check_branch
          %1234 = sbr.rel (%p1232) target = $region79
        $region78: #{tpu_custom_call.1} parent=63 // pred_region
          %1236 = vsyncadd %s1228, 0
          %s1237 = smul.addr %s29, 2
          %s1238 = sadd.s32 %s30, %s1237
          %s1239 = smul.addr %s1238, 8
          %s1240 = scalar_lea.hbm %s11, %s1239
          %s1242 = sshll.u32 %s1231, 4
          %s1243 = int_to_ptr.vmem [resolvable:$true] %s1242
          %s1244 = sshll.u32 %s1240, 4
          %s1245 = int_to_ptr.hbm [resolvable:$true] %s1244
          %1247 = dma.vmem_to_hbm [thread:$0]  %s1243, 128, %s1245, %s1228
        $region79: #{tpu_custom_call.1} parent=63 // pred_fallthru
          _
      $region64: #{tpu_custom_call.1} parent=5 // pred_fallthru
        _
      %p1248 = scmp.le.s32.totalorder 2, %s20
      // Predicated region
      $region80: #{tpu_custom_call.1} parent=5 // pred_check
        %p1249 = pneg %p1248
      $region81: #{tpu_custom_call.1} parent=5 // pred_check_branch
        %1251 = sbr.rel (%p1249) target = $region83
      $region82: #{tpu_custom_call.1} parent=5 // pred_region
        %s1252 = ssub.s32 %s20, 2
        // Predicated region
        $region84: #{tpu_custom_call.1} parent=82 // pred_check
          %p1253 = pneg %p301
        $region85: #{tpu_custom_call.1} parent=82 // pred_check_branch
          %1255 = sbr.rel (%p1253) target = $region87
        $region86: #{tpu_custom_call.1} parent=82 // pred_region
          %s1256 = sand.u32 %s286, 1
          %s1257 = scalar_lea.sflag [#allocation7], %s1256
          %s1258 = sand.u32 %s286, 1
          %s1259 = smul.addr %s1258, 8
          %s1260 = scalar_lea.vmem [#allocation6], %s1259
          %1262 = dma.done %s1257, 128
        $region87: #{tpu_custom_call.1} parent=82 // pred_fallthru
          _
      $region83: #{tpu_custom_call.1} parent=5 // pred_fallthru
        _
    $region6: #{tpu_custom_call.1} parent=1 // loop_footer
      %s24 = sadd.s32 1, %s20
    $region7: #{tpu_custom_call.1} parent=1 // loop_footer_branch
      %19 = sbr.rel target = $region3
    $region8: #{tpu_custom_call.1} parent=1 // loop_exit
      _
    %1263 = vsyncpa [#allocation7], 1
    %s1264 = scalar_lea.sflag [#allocation7], 1
    %1265 = vsyncpa %s1264, 1

</llo_original>
